<compile_context>
chip_gen: v6e
topology: v6e:2x2x1
jax: 0.10.0
libtpu: 0.0.40
codegen_flags: <defaults>
</compile_context>

<pallas_src>
import jax
import jax.numpy as jnp
from jax.experimental import pallas as pl
from jax.experimental.pallas import tpu as pltpu

NEG = -1e30        # finite "minus infinity" (must stay finite: it feeds MXU matmuls)
USE_BN = False     # TODO(synk): BatchNorm1d (training-mode batch stats) not implemented


def _round_up(x, m):
    return ((x + m - 1) // m) * m


def _make_kernel(comp_op):
    assert comp_op in ("add", "mul")

    def kernel(u_ref, e_ref, v_ref, dst_ref, w_ref, out_ref, m_ref, l_ref, acc_ref):
        # u/e/v_ref: [TE, Hp]   dst_ref: [TE, 1] int32   w_ref: [Hp, Hp]
        # out_ref:   [TN, Hp]
        # scratch:   m_ref/l_ref: [1, TN]   acc_ref: [Hp, TN]   (node-minor layout)
        te = u_ref.shape[0]
        tn = m_ref.shape[1]
        n_lo = pl.program_id(0) * tn
        e_idx = pl.program_id(1)

        @pl.when(e_idx == 0)
        def _init():
            m_ref[...] = jnp.full_like(m_ref, NEG)
            l_ref[...] = jnp.zeros_like(l_ref)
            acc_ref[...] = jnp.zeros_like(acc_ref)

        u = u_ref[...]
        e = e_ref[...]
        v = v_ref[...]

        # comp_emb = u (+|*) e      (fn.u_add_e / fn.u_mul_e)
        comp = u + e if comp_op == "add" else u * e            # [TE, Hp]
        # score = <comp_emb, v_emb> (fn.e_dot_v)
        s = jnp.sum(comp * v, axis=-1, keepdims=True)          # [TE, 1]

        # One-hot destination tile, built in-kernel (never touches HBM).
        dst = dst_ref[...]                                     # [TE, 1] int32 (-1 = padding)
        col = jax.lax.broadcasted_iota(jnp.int32, (te, tn), 1) + n_lo
        d_bool = col == dst                                    # [TE, TN]
        d = d_bool.astype(jnp.float32)

        # --- online (flash-style) edge-softmax over incoming edges of each node ---
        m_old = m_ref[...]                                     # [1, TN]
        tile_max = jnp.max(jnp.where(d_bool, s, NEG), axis=0, keepdims=True)
        m_new = jnp.maximum(m_old, tile_max)                   # [1, TN]
        m_ref[...] = m_new

        # Gather the per-node running max back to edges on the MXU (exact: each one-hot
        # row has exactly one 1 inside its owning N-tile, all-zero otherwise).
        m_edge = jax.lax.dot_general(
            d, m_new, (((1,), (1,)), ((), ())),
            preferred_element_type=jnp.float32)                # [TE, 1]
        in_tile = (dst >= n_lo) & (dst < n_lo + tn)            # [TE, 1]
        p = jnp.exp(jnp.where(in_tile, s - m_edge, NEG))       # [TE, 1]; 0 for pad / other tile

        alpha = jnp.exp(m_old - m_new)                         # [1, TN] rescale of old state

        # Per-node denominator update: scatter-add of p via MXU.
        l_contrib = jax.lax.dot_general(
            p, d, (((0,), (0,)), ((), ())),
            preferred_element_type=jnp.float32)                # [1, TN]
        l_ref[...] = alpha * l_ref[...] + l_contrib

        # Weighted messages + per-node aggregation (copy_e + sum) on the MXU, accumulated
        # node-minor so the [1, TN] rescale broadcasts without a transpose.
        wcomp = comp * p                                       # [TE, Hp]
        acc_contrib = jax.lax.dot_general(
            wcomp, d, (((0,), (0,)), ((), ())),
            preferred_element_type=jnp.float32)                # [Hp, TN]
        acc_ref[...] = alpha * acc_ref[...] + acc_contrib

        # --- finalize: normalize, project with neigh_w, tanh ---
        @pl.when(e_idx == pl.num_programs(1) - 1)
        def _finalize():
            l = l_ref[...]                                     # [1, TN]
            # once-per-node op -> exact reciprocal costs nothing; zero-in-degree nodes -> 0
            inv_l = jnp.where(l > 0.0, pl.reciprocal(l, approx=False), 0.0)
            neigh_t = acc_ref[...] * inv_l                     # [Hp, TN]  (= neigh^T)
            out = jax.lax.dot_general(
                neigh_t, w_ref[...], (((0,), (0,)), ((), ())),
                preferred_element_type=jnp.float32)            # [TN, Hp] = neigh @ W
            out_ref[...] = jnp.tanh(out).astype(out_ref.dtype)

    return kernel


def structure_layer(ent_emb, rel_emb, src, dst, rel_id, neigh_w,
                    comp_op="add", block_e=256, block_n=128):
    """Pure-JAX gathers + one tiled Pallas kernel (edge-softmax message passing)."""
    n_ent, h_dim = ent_emb.shape
    n_edges = src.shape[0]

    u_emb = ent_emb[src]            # [E, H]
    e_emb = rel_emb[rel_id]         # [E, H]
    v_emb = ent_emb[dst]            # [E, H]

    h_pad = _round_up(h_dim, 128)                                   # lane-dense features
    tn = min(_round_up(n_ent, 128), _round_up(block_n, 128))        # node tile (lanes)
    n_pad = _round_up(n_ent, tn)
    te = min(_round_up(n_edges, 8), _round_up(block_e, 8))          # edge tile (sublanes)
    e_pad = _round_up(n_edges, te)

    def pad2(x):
        return jnp.pad(x, ((0, e_pad - n_edges), (0, h_pad - h_dim)))

    u_p = pad2(u_emb)
    e_p = pad2(e_emb)
    v_p = pad2(v_emb)
    dst_p = jnp.pad(dst.astype(jnp.int32).reshape(-1, 1),
                    ((0, e_pad - n_edges), (0, 0)), constant_values=-1)
    w_p = jnp.pad(neigh_w, ((0, h_pad - h_dim), (0, h_pad - h_dim)))

    grid = (n_pad // tn, e_pad // te)
    kernel = _make_kernel(comp_op)

    out = pl.pallas_call(
        kernel,
        out_shape=jax.ShapeDtypeStruct((n_pad, h_pad), jnp.float32),
        grid_spec=pltpu.PrefetchScalarGridSpec(
            num_scalar_prefetch=0,
            grid=grid,
            in_specs=[
                pl.BlockSpec((te, h_pad), lambda n, k: (k, 0)),      # u (src emb)
                pl.BlockSpec((te, h_pad), lambda n, k: (k, 0)),      # e (rel emb)
                pl.BlockSpec((te, h_pad), lambda n, k: (k, 0)),      # v (dst emb)
                pl.BlockSpec((te, 1), lambda n, k: (k, 0)),          # dst indices
                pl.BlockSpec((h_pad, h_pad), lambda n, k: (0, 0)),   # W (resident)
            ],
            out_specs=pl.BlockSpec((tn, h_pad), lambda n, k: (n, 0)),
            scratch_shapes=[
                pltpu.VMEM((1, tn), jnp.float32),       # running per-node max
                pltpu.VMEM((1, tn), jnp.float32),       # running per-node denominator
                pltpu.VMEM((h_pad, tn), jnp.float32),   # running weighted-message sum
            ],
        ),
        compiler_params=pltpu.CompilerParams(
            dimension_semantics=("parallel", "arbitrary")),
    )(u_p, e_p, v_p, dst_p, w_p)

    return out[:n_ent, :h_dim]


def reference(ent_emb, rel_emb, src, dst, rel_id, neigh_w, comp_op="add"):
    """Plain-JAX segment-op reference (mirrors the DGL message passing)."""
    n_ent = ent_emb.shape[0]
    u = ent_emb[src]
    e = rel_emb[rel_id]
    v = ent_emb[dst]
    comp = u + e if comp_op == "add" else u * e
    score = jnp.sum(comp * v, axis=-1)
    m = jax.ops.segment_max(score, dst, num_segments=n_ent)
    p = jnp.exp(score - m[dst])
    denom = jax.ops.segment_sum(p, dst, num_segments=n_ent)
    norm = p / denom[dst]
    neigh = jax.ops.segment_sum(comp * norm[:, None], dst, num_segments=n_ent)
    return jnp.tanh(neigh @ neigh_w)


if __name__ == "__main__":
    key = jax.random.PRNGKey(0)
    # small but non-trivial: 2 node tiles (160 -> 256 padded) and 4 edge tiles (block_e=64)
    # so the multi-tile online-softmax / out-of-tile-edge / zero-in-degree paths all run.
    n_ent, n_rel, h_dim, n_edges = 160, 4, 32, 200

    k1, k2, k3, k4, k5, k6 = jax.random.split(key, 6)
    ent_emb = jax.random.normal(k1, (n_ent, h_dim), dtype=jnp.float32)
    rel_emb = jax.random.normal(k2, (2 * n_rel, h_dim), dtype=jnp.float32)
    bound = (6.0 / (2 * h_dim)) ** 0.5          # xavier-ish init for neigh_w = get_param(h,h)
    neigh_w = jax.random.uniform(k3, (h_dim, h_dim), dtype=jnp.float32,
                                 minval=-bound, maxval=bound)
    src = jax.random.randint(k4, (n_edges,), 0, n_ent)
    dst = jax.random.randint(k5, (n_edges,), 0, n_ent)
    rel_id = jax.random.randint(k6, (n_edges,), 0, 2 * n_rel)

    out = structure_layer(ent_emb, rel_emb, src, dst, rel_id, neigh_w,
                          comp_op="add", block_e=64, block_n=128)
    out = jax.block_until_ready(out)

    ref = reference(ent_emb, rel_emb, src, dst, rel_id, neigh_w, comp_op="add")
    assert out.shape == (n_ent, h_dim)
    err = jnp.max(jnp.abs(out - ref))
    assert jnp.allclose(out, ref, atol=1e-4, rtol=1e-4), f"mismatch vs reference, max abs err={err}"
    print("KERNEL_OK")
</pallas_src>

<mosaic_0001>
module attributes {stable_mosaic.version = 11 : i64} {
  func.func @kernel(%arg0: i32, %arg1: i32, %arg2: memref<64x128xf32, #tpu.memory_space<vmem>>, %arg3: memref<64x128xf32, #tpu.memory_space<vmem>>, %arg4: memref<64x128xf32, #tpu.memory_space<vmem>>, %arg5: memref<64x1xi32, #tpu.memory_space<vmem>>, %arg6: memref<128x128xf32, #tpu.memory_space<vmem>>, %arg7: memref<128x128xf32, #tpu.memory_space<vmem>>, %arg8: memref<1x128xf32, #tpu.memory_space<vmem>>, %arg9: memref<1x128xf32, #tpu.memory_space<vmem>>, %arg10: memref<128x128xf32, #tpu.memory_space<vmem>>) attributes {dimension_semantics = [#tpu.dimension_semantics<parallel>, #tpu.dimension_semantics<arbitrary>], iteration_bounds = array<i64: 2, 4>, scalar_prefetch = 0 : i64, scratch_operands = 3 : i64, tpu.core_type = #tpu.core_type<tc>, window_params = [{transform_indices = @transform_0, window_bounds = array<i64: 64, 128>}, {transform_indices = @transform_1, window_bounds = array<i64: 64, 128>}, {transform_indices = @transform_2, window_bounds = array<i64: 64, 128>}, {transform_indices = @transform_3, window_bounds = array<i64: 64, 1>}, {pipeline_mode = #tpu.pipeline_mode<synchronous>, transform_indices = @transform_4, window_bounds = array<i64: 128, 128>}, {transform_indices = @transform_5, window_bounds = array<i64: 128, 128>}]} {
    %c128_i32 = arith.constant 128 : i32
    %0 = arith.muli %arg0, %c128_i32 : i32
    %c0_i32 = arith.constant 0 : i32
    %1 = arith.cmpi eq, %arg1, %c0_i32 : i32
    %2 = arith.extui %1 : i1 to i32
    %c0_i32_0 = arith.constant 0 : i32
    %3 = arith.cmpi ne, %2, %c0_i32_0 : i32
    scf.if %3 {
      %cst_28 = arith.constant -1.000000e+30 : f32
      %57 = vector.broadcast %cst_28 : f32 to vector<1x128xf32>
      %c0_29 = arith.constant 0 : index
      %c0_30 = arith.constant 0 : index
      %58 = vector.load %arg8[%c0_29, %c0_30] : memref<1x128xf32, #tpu.memory_space<vmem>>, vector<1x128xf32>
      tpu.vector_store %arg8[%c0_29, %c0_30], %57 {strides = array<i32>} : memref<1x128xf32, #tpu.memory_space<vmem>>, vector<1x128xf32>,
      %cst_31 = arith.constant 0.000000e+00 : f32
      %59 = vector.broadcast %cst_31 : f32 to vector<1x128xf32>
      %c0_32 = arith.constant 0 : index
      %c0_33 = arith.constant 0 : index
      %60 = vector.load %arg9[%c0_32, %c0_33] : memref<1x128xf32, #tpu.memory_space<vmem>>, vector<1x128xf32>
      tpu.vector_store %arg9[%c0_32, %c0_33], %59 {strides = array<i32>} : memref<1x128xf32, #tpu.memory_space<vmem>>, vector<1x128xf32>,
      %cst_34 = arith.constant 0.000000e+00 : f32
      %61 = vector.broadcast %cst_34 : f32 to vector<128x128xf32>
      %c0_35 = arith.constant 0 : index
      %c0_36 = arith.constant 0 : index
      %62 = vector.load %arg10[%c0_35, %c0_36] : memref<128x128xf32, #tpu.memory_space<vmem>>, vector<128x128xf32>
      tpu.vector_store %arg10[%c0_35, %c0_36], %61 {strides = array<i32>} : memref<128x128xf32, #tpu.memory_space<vmem>>, vector<128x128xf32>,
    } else {
    }
    %c0 = arith.constant 0 : index
    %c0_1 = arith.constant 0 : index
    %4 = vector.load %arg2[%c0, %c0_1] : memref<64x128xf32, #tpu.memory_space<vmem>>, vector<64x128xf32>
    %c0_2 = arith.constant 0 : index
    %c0_3 = arith.constant 0 : index
    %5 = vector.load %arg3[%c0_2, %c0_3] : memref<64x128xf32, #tpu.memory_space<vmem>>, vector<64x128xf32>
    %c0_4 = arith.constant 0 : index
    %c0_5 = arith.constant 0 : index
    %6 = vector.load %arg4[%c0_4, %c0_5] : memref<64x128xf32, #tpu.memory_space<vmem>>, vector<64x128xf32>
    %7 = arith.addf %4, %5 : vector<64x128xf32>
    %8 = arith.mulf %7, %6 : vector<64x128xf32>
    %cst = arith.constant dense<0.000000e+00> : vector<64xf32>
    %9 = vector.multi_reduction <add>, %8, %cst [1] : vector<64x128xf32> to vector<64xf32>
    %10 = vector.shape_cast %9 : vector<64xf32> to vector<64x1xf32>
    %c0_6 = arith.constant 0 : index
    %c0_7 = arith.constant 0 : index
    %11 = vector.load %arg5[%c0_6, %c0_7] : memref<64x1xi32, #tpu.memory_space<vmem>>, vector<64x1xi32>
    %12 = tpu.iota {dimensions = array<i32: 1>} : vector<64x128xi32>
    %13 = vector.broadcast %0 : i32 to vector<64x128xi32>
    %14 = arith.addi %12, %13 : vector<64x128xi32>
    %15 = vector.broadcast %11 : vector<64x1xi32> to vector<64x128xi32>
    %16 = arith.cmpi eq, %14, %15 : vector<64x128xi32>
    %17 = arith.extui %16 : vector<64x128xi1> to vector<64x128xi32>
    %18 = arith.sitofp %17 : vector<64x128xi32> to vector<64x128xf32>
    %c0_8 = arith.constant 0 : index
    %c0_9 = arith.constant 0 : index
    %19 = vector.load %arg8[%c0_8, %c0_9] : memref<1x128xf32, #tpu.memory_space<vmem>>, vector<1x128xf32>
    %cst_10 = arith.constant -1.000000e+30 : f32
    %20 = vector.shape_cast %10 : vector<64x1xf32> to vector<64x1xf32>
    %21 = vector.broadcast %20 : vector<64x1xf32> to vector<64x128xf32>
    %22 = vector.broadcast %cst_10 : f32 to vector<64x128xf32>
    %23 = arith.select %16, %21, %22 : vector<64x128xi1>, vector<64x128xf32>
    %cst_11 = arith.constant dense<0xFF800000> : vector<128xf32>
    %24 = vector.multi_reduction <maximumf>, %23, %cst_11 [0] : vector<64x128xf32> to vector<128xf32>
    %25 = vector.shape_cast %24 : vector<128xf32> to vector<1x128xf32>
    %26 = arith.maximumf %19, %25 : vector<1x128xf32>
    %c0_12 = arith.constant 0 : index
    %c0_13 = arith.constant 0 : index
    %27 = vector.load %arg8[%c0_12, %c0_13] : memref<1x128xf32, #tpu.memory_space<vmem>>, vector<1x128xf32>
    tpu.vector_store %arg8[%c0_12, %c0_13], %26 {strides = array<i32>} : memref<1x128xf32, #tpu.memory_space<vmem>>, vector<1x128xf32>,
    %cst_14 = arith.constant dense<0.000000e+00> : vector<64x1xf32>
    %28 = tpu.matmul %18, %26, %cst_14 {dimension_numbers = #tpu.dot_dimension_numbers<[1], [1], [0], [0], [0, 0, 1, 0], [], []>} : vector<64x128xf32>, vector<1x128xf32>, vector<64x1xf32> -> vector<64x1xf32>
    %29 = vector.broadcast %0 : i32 to vector<64x1xi32>
    %30 = arith.cmpi sge, %11, %29 : vector<64x1xi32>
    %c128_i32_15 = arith.constant 128 : i32
    %31 = arith.addi %0, %c128_i32_15 : i32
    %32 = vector.broadcast %31 : i32 to vector<64x1xi32>
    %33 = arith.cmpi slt, %11, %32 : vector<64x1xi32>
    %34 = arith.andi %30, %33 : vector<64x1xi1>
    %35 = arith.subf %10, %28 : vector<64x1xf32>
    %cst_16 = arith.constant -1.000000e+30 : f32
    %36 = vector.broadcast %cst_16 : f32 to vector<64x1xf32>
    %37 = arith.select %34, %35, %36 : vector<64x1xi1>, vector<64x1xf32>
    %38 = math.exp %37 : vector<64x1xf32>
    %39 = arith.subf %19, %26 : vector<1x128xf32>
    %40 = math.exp %39 : vector<1x128xf32>
    %cst_17 = arith.constant dense<0.000000e+00> : vector<1x128xf32>
    %41 = tpu.matmul %38, %18, %cst_17 {dimension_numbers = #tpu.dot_dimension_numbers<[0], [0], [1], [1], [0, 1, 1, 1], [], []>} : vector<64x1xf32>, vector<64x128xf32>, vector<1x128xf32> -> vector<1x128xf32>
    %c0_18 = arith.constant 0 : index
    %c0_19 = arith.constant 0 : index
    %42 = vector.load %arg9[%c0_18, %c0_19] : memref<1x128xf32, #tpu.memory_space<vmem>>, vector<1x128xf32>
    %43 = arith.mulf %40, %42 : vector<1x128xf32>
    %44 = arith.addf %43, %41 : vector<1x128xf32>
    %c0_20 = arith.constant 0 : index
    %c0_21 = arith.constant 0 : index
    %45 = vector.load %arg9[%c0_20, %c0_21] : memref<1x128xf32, #tpu.memory_space<vmem>>, vector<1x128xf32>
    tpu.vector_store %arg9[%c0_20, %c0_21], %44 {strides = array<i32>} : memref<1x128xf32, #tpu.memory_space<vmem>>, vector<1x128xf32>,
    %46 = vector.broadcast %38 : vector<64x1xf32> to vector<64x128xf32>
    %47 = arith.mulf %7, %46 : vector<64x128xf32>
    %cst_22 = arith.constant dense<0.000000e+00> : vector<128x128xf32>
    %48 = tpu.matmul %47, %18, %cst_22 {dimension_numbers = #tpu.dot_dimension_numbers<[0], [0], [1], [1], [0, 1, 1, 1], [], []>} : vector<64x128xf32>, vector<64x128xf32>, vector<128x128xf32> -> vector<128x128xf32>
    %c0_23 = arith.constant 0 : index
    %c0_24 = arith.constant 0 : index
    %49 = vector.load %arg10[%c0_23, %c0_24] : memref<128x128xf32, #tpu.memory_space<vmem>>, vector<128x128xf32>
    %50 = vector.broadcast %40 : vector<1x128xf32> to vector<128x128xf32>
    %51 = arith.mulf %50, %49 : vector<128x128xf32>
    %52 = arith.addf %51, %48 : vector<128x128xf32>
    %c0_25 = arith.constant 0 : index
    %c0_26 = arith.constant 0 : index
    %53 = vector.load %arg10[%c0_25, %c0_26] : memref<128x128xf32, #tpu.memory_space<vmem>>, vector<128x128xf32>
    tpu.vector_store %arg10[%c0_25, %c0_26], %52 {strides = array<i32>} : memref<128x128xf32, #tpu.memory_space<vmem>>, vector<128x128xf32>,
    %c3_i32 = arith.constant 3 : i32
    %54 = arith.cmpi eq, %arg1, %c3_i32 : i32
    %55 = arith.extui %54 : i1 to i32
    %c0_i32_27 = arith.constant 0 : i32
    %56 = arith.cmpi ne, %55, %c0_i32_27 : i32
    scf.if %56 {
      %c0_28 = arith.constant 0 : index
      %c0_29 = arith.constant 0 : index
      %57 = vector.load %arg9[%c0_28, %c0_29] : memref<1x128xf32, #tpu.memory_space<vmem>>, vector<1x128xf32>
      %cst_30 = arith.constant 0.000000e+00 : f32
      %58 = vector.broadcast %cst_30 : f32 to vector<1x128xf32>
      %59 = arith.cmpf ogt, %57, %58 : vector<1x128xf32>
      %60 = tpu.reciprocal %57 : vector<1x128xf32> -> vector<1x128xf32>
      %cst_31 = arith.constant 0.000000e+00 : f32
      %61 = vector.broadcast %cst_31 : f32 to vector<1x128xf32>
      %62 = arith.select %59, %60, %61 : vector<1x128xi1>, vector<1x128xf32>
      %c0_32 = arith.constant 0 : index
      %c0_33 = arith.constant 0 : index
      %63 = vector.load %arg10[%c0_32, %c0_33] : memref<128x128xf32, #tpu.memory_space<vmem>>, vector<128x128xf32>
      %64 = vector.broadcast %62 : vector<1x128xf32> to vector<128x128xf32>
      %65 = arith.mulf %63, %64 : vector<128x128xf32>
      %c0_34 = arith.constant 0 : index
      %c0_35 = arith.constant 0 : index
      %66 = vector.load %arg6[%c0_34, %c0_35] : memref<128x128xf32, #tpu.memory_space<vmem>>, vector<128x128xf32>
      %cst_36 = arith.constant dense<0.000000e+00> : vector<128x128xf32>
      %67 = tpu.matmul %65, %66, %cst_36 {dimension_numbers = #tpu.dot_dimension_numbers<[0], [0], [1], [1], [0, 1, 1, 1], [], []>} : vector<128x128xf32>, vector<128x128xf32>, vector<128x128xf32> -> vector<128x128xf32>
      %68 = math.tanh %67 : vector<128x128xf32>
      %c0_37 = arith.constant 0 : index
      %c0_38 = arith.constant 0 : index
      %69 = vector.load %arg7[%c0_37, %c0_38] : memref<128x128xf32, #tpu.memory_space<vmem>>, vector<128x128xf32>
      tpu.vector_store %arg7[%c0_37, %c0_38], %68 {strides = array<i32>} : memref<128x128xf32, #tpu.memory_space<vmem>>, vector<128x128xf32>,
    } else {
    }
    return
  }
  func.func @transform_0(%arg0: i32, %arg1: i32) -> (i32, i32) {
    %c0_i32 = arith.constant 0 : i32
    %c0_i32_0 = arith.constant 0 : i32
    return %arg1, %c0_i32 : i32, i32
  }
  func.func @transform_1(%arg0: i32, %arg1: i32) -> (i32, i32) {
    %c0_i32 = arith.constant 0 : i32
    %c0_i32_0 = arith.constant 0 : i32
    return %arg1, %c0_i32 : i32, i32
  }
  func.func @transform_2(%arg0: i32, %arg1: i32) -> (i32, i32) {
    %c0_i32 = arith.constant 0 : i32
    %c0_i32_0 = arith.constant 0 : i32
    return %arg1, %c0_i32 : i32, i32
  }
  func.func @transform_3(%arg0: i32, %arg1: i32) -> (i32, i32) {
    %c0_i32 = arith.constant 0 : i32
    %c0_i32_0 = arith.constant 0 : i32
    return %arg1, %c0_i32 : i32, i32
  }
  func.func @transform_4(%arg0: i32, %arg1: i32) -> (i32, i32) {
    %c0_i32 = arith.constant 0 : i32
    %c0_i32_0 = arith.constant 0 : i32
    %c0_i32_1 = arith.constant 0 : i32
    return %c0_i32, %c0_i32_0 : i32, i32
  }
  func.func @transform_5(%arg0: i32, %arg1: i32) -> (i32, i32) {
    %c0_i32 = arith.constant 0 : i32
    %c0_i32_0 = arith.constant 0 : i32
    return %arg0, %c0_i32 : i32, i32
  }
}

</mosaic_0001>

<llo_original>
// kernel: tpu_custom_call.1
$region0: #{tpu_custom_call.1}
  #allocation0 [shape = 'u32[]', space=smem, size = 0x4, offset = 0x4, fixed_abs, tag = 'smem constant byte address 0x4 - core index']
  #allocation1 [shape = 'u32[144,128]{1,0:T(1,128)}', space=vmem, size = 0x12000, scoped, tag = 'internal scratch']
  #allocation2 [shape = 'f32[1,128]{1,0:T(1,128)}', space=vmem, size = 0x200, scoped, tag = 'scratch operand']
  #allocation3 [shape = 'f32[1,128]{1,0:T(1,128)}', space=vmem, size = 0x200, scoped, tag = 'scratch operand']
  #allocation4 [shape = 'f32[128,128]{1,0:T(8,128)}', space=vmem, size = 0x10000, scoped, tag = 'scratch operand']
  %s0 = inlined_call_operand.vmem [shape: f32[256,128], index: 0, kind: input, shape index: {}]
  %s1 = inlined_call_operand.hbm [shape: f32[256,128], index: 1, kind: input, shape index: {}]
  %s2 = inlined_call_operand.hbm [shape: f32[256,128], index: 2, kind: input, shape index: {}]
  %s3 = inlined_call_operand.vmem [shape: s32[256,1], index: 3, kind: input, shape index: {}]
  %s4 = inlined_call_operand.hbm [shape: f32[128,128], index: 4, kind: input, shape index: {}]
  %s5 = inlined_call_operand.hbm [shape: f32[256,128], index: 5, kind: output, shape index: {}]
  %s6 = sld [smem:[#allocation0]]
  $region73: #{tpu_custom_call.1} parent=0
    _
  %s8 = ssub.s32 1, %s6
  %s9 = scalar_select 0, %s8, %s6
  $region1: #{tpu_custom_call.1} parent=0
    #allocation5 [shape = 'u8[65536]{0}', space=vmem, size = 0x10000, scoped, tag = 'input window, operand 1']
    #allocation6 [shape = 's32[2]{0}', space=sflag, size = 0x8, scoped, tag = 'scoped memory for tpu_custom_call.1']
    #allocation7 [shape = 's32[2]{0}', space=sflag, size = 0x8, scoped, tag = 'scoped memory for tpu_custom_call.1']
    #allocation8 [shape = 'u8[65536]{0}', space=vmem, size = 0x10000, scoped, tag = 'input window, operand 2']
    #allocation9 [shape = 's32[2]{0}', space=sflag, size = 0x8, scoped, tag = 'scoped memory for tpu_custom_call.1']
    #allocation10 [shape = 'u8[65536]{0}', space=vmem, size = 0x10000, scoped, tag = 'input window, operand 4, single buffered']
    #allocation11 [shape = 'u8[131072]{0}', space=vmem, size = 0x20000, scoped, tag = 'output window, operand 0']
    %10 = vsyncpa [#allocation6], 0
    %s11 = scalar_lea.sflag [#allocation6], 1
    %12 = vsyncpa %s11, 0
    %13 = vsyncpa [#allocation9], 0
    %s14 = scalar_lea.sflag [#allocation9], 1
    %15 = vsyncpa %s14, 0
    %16 = vsyncpa [#allocation7], 0
    %s17 = scalar_lea.sflag [#allocation7], 1
    %18 = vsyncpa %s17, 0
    loop: start=0, step=1, limit=10
    $region2: #{tpu_custom_call.1} parent=1 // loop_pre_header
      _
    $region3: #{tpu_custom_call.1} parent=1 // loop_header
      %s20 = sphi 0, %s24
      %p21 = scmp.ge.s32.totalorder %s20, 10
      %s27 = sphi 0, %s39
      %s28 = sphi 0, %s35
      %s29 = sphi 0, %s27
      %s30 = sphi 0, %s28
      %s31 = sphi 0, %s29
      %s32 = sphi 0, %s30
      %s42 = sphi 0, %s44
      %s45 = sphi 0, %s42
      %s46 = sphi 0, %s45
      %s62 = sphi 0, %s46
      %s68 = sphi 0, %s70
      %s71 = sphi 0, %s68
      %s72 = sphi 0, %s71
      %s88 = sphi 0, %s72
      %s94 = sphi 0, %s96
      %s97 = sphi 0, %s94
      %s98 = sphi 0, %s97
      %s114 = sphi 0, %s98
      %s120 = sphi 0, %s122
      %s123 = sphi 0, %s120
      %s124 = sphi 0, %s123
      %s140 = sphi 0, %s124
      %s144 = sphi 0, %s144
      %s146 = sphi 0, %s144
      %s147 = sphi 0, %s146
      %s161 = sphi 0, %s147
      %s167 = sphi 0, %s169
      %s170 = sphi 0, %s167
      %s171 = sphi 0, %s170
      %s187 = sphi 0, %s171
    $region4: #{tpu_custom_call.1} parent=1 // loop_header_branch
      %23 = sbr.rel (%p21) target = $region8
    $region5: #{tpu_custom_call.1} parent=1 // loop_body
      %s25 = ssub.s32 %s20, 1
      %s26 = ssub.s32 %s20, 2
      %s33 = sadd.s32 1, %s28
      %p34 = scmp.ge.s32.totalorder %s33, 4
      %s35 = scalar_select %p34, 0, %s33
      %s36 = sadd.s32 1, %s27
      %s37 = scalar_select %p34, %s36, %s27
      %p38 = scmp.ge.s32.totalorder %s37, 2
      %s39 = scalar_select %p38, 0, %s37
      %s40 = ssub.s32 %s28, %s35
      %p41 = scmp.eq.s32.totalorder %s40, 0
      %s43 = sadd.s32 %s42, 1
      %s44 = scalar_select %p41, %s42, %s43
      %p47 = pneg %p41
      %p48 = scmp.eq.s32.totalorder %s20, 7
      %p49 = por %p47, %p48
      %p50 = scmp.ne.s32.totalorder %s42, %s45
      %p51 = scmp.eq.s32.totalorder %s20, 0
      %p52 = por %p50, %p51
      %p53 = scmp.ne.s32.totalorder %s42, %s45
      %p54 = scmp.eq.s32.totalorder %s25, 7
      %p55 = por %p53, %p54
      %p56 = scmp.ne.s32.totalorder %s45, %s46
      %p57 = scmp.eq.s32.totalorder %s25, 0
      %p58 = por %p56, %p57
      %p59 = scmp.ne.s32.totalorder %s45, %s46
      %p60 = scmp.eq.s32.totalorder %s26, 7
      %p61 = por %p59, %p60
      %p63 = scmp.ne.s32.totalorder %s46, %s62
      %p64 = scmp.eq.s32.totalorder %s26, 0
      %p65 = por %p63, %p64
      %s66 = ssub.s32 %s28, %s35
      %p67 = scmp.eq.s32.totalorder %s66, 0
      %s69 = sadd.s32 %s68, 1
      %s70 = scalar_select %p67, %s68, %s69
      %p73 = pneg %p67
      %p74 = scmp.eq.s32.totalorder %s20, 7
      %p75 = por %p73, %p74
      %p76 = scmp.ne.s32.totalorder %s68, %s71
      %p77 = scmp.eq.s32.totalorder %s20, 0
      %p78 = por %p76, %p77
      %p79 = scmp.ne.s32.totalorder %s68, %s71
      %p80 = scmp.eq.s32.totalorder %s25, 7
      %p81 = por %p79, %p80
      %p82 = scmp.ne.s32.totalorder %s71, %s72
      %p83 = scmp.eq.s32.totalorder %s25, 0
      %p84 = por %p82, %p83
      %p85 = scmp.ne.s32.totalorder %s71, %s72
      %p86 = scmp.eq.s32.totalorder %s26, 7
      %p87 = por %p85, %p86
      %p89 = scmp.ne.s32.totalorder %s72, %s88
      %p90 = scmp.eq.s32.totalorder %s26, 0
      %p91 = por %p89, %p90
      %s92 = ssub.s32 %s28, %s35
      %p93 = scmp.eq.s32.totalorder %s92, 0
      %s95 = sadd.s32 %s94, 1
      %s96 = scalar_select %p93, %s94, %s95
      %p99 = pneg %p93
      %p100 = scmp.eq.s32.totalorder %s20, 7
      %p101 = por %p99, %p100
      %p102 = scmp.ne.s32.totalorder %s94, %s97
      %p103 = scmp.eq.s32.totalorder %s20, 0
      %p104 = por %p102, %p103
      %p105 = scmp.ne.s32.totalorder %s94, %s97
      %p106 = scmp.eq.s32.totalorder %s25, 7
      %p107 = por %p105, %p106
      %p108 = scmp.ne.s32.totalorder %s97, %s98
      %p109 = scmp.eq.s32.totalorder %s25, 0
      %p110 = por %p108, %p109
      %p111 = scmp.ne.s32.totalorder %s97, %s98
      %p112 = scmp.eq.s32.totalorder %s26, 7
      %p113 = por %p111, %p112
      %p115 = scmp.ne.s32.totalorder %s98, %s114
      %p116 = scmp.eq.s32.totalorder %s26, 0
      %p117 = por %p115, %p116
      %s118 = ssub.s32 %s28, %s35
      %p119 = scmp.eq.s32.totalorder %s118, 0
      %s121 = sadd.s32 %s120, 1
      %s122 = scalar_select %p119, %s120, %s121
      %p125 = pneg %p119
      %p126 = scmp.eq.s32.totalorder %s20, 7
      %p127 = por %p125, %p126
      %p128 = scmp.ne.s32.totalorder %s120, %s123
      %p129 = scmp.eq.s32.totalorder %s20, 0
      %p130 = por %p128, %p129
      %p131 = scmp.ne.s32.totalorder %s120, %s123
      %p132 = scmp.eq.s32.totalorder %s25, 7
      %p133 = por %p131, %p132
      %p134 = scmp.ne.s32.totalorder %s123, %s124
      %p135 = scmp.eq.s32.totalorder %s25, 0
      %p136 = por %p134, %p135
      %p137 = scmp.ne.s32.totalorder %s123, %s124
      %p138 = scmp.eq.s32.totalorder %s26, 7
      %p139 = por %p137, %p138
      %p141 = scmp.ne.s32.totalorder %s124, %s140
      %p142 = scmp.eq.s32.totalorder %s26, 0
      %p143 = por %p141, %p142
      %s145 = sadd.s32 %s144, 1
      %p148 = scmp.eq.s32.totalorder %s20, 7
      %p149 = scmp.ne.s32.totalorder %s144, %s146
      %p150 = scmp.eq.s32.totalorder %s20, 0
      %p151 = por %p149, %p150
      %p152 = scmp.ne.s32.totalorder %s144, %s146
      %p153 = scmp.eq.s32.totalorder %s25, 7
      %p154 = por %p152, %p153
      %p155 = scmp.ne.s32.totalorder %s146, %s147
      %p156 = scmp.eq.s32.totalorder %s25, 0
      %p157 = por %p155, %p156
      %p158 = scmp.ne.s32.totalorder %s146, %s147
      %p159 = scmp.eq.s32.totalorder %s26, 7
      %p160 = por %p158, %p159
      %p162 = scmp.ne.s32.totalorder %s147, %s161
      %p163 = scmp.eq.s32.totalorder %s26, 0
      %p164 = por %p162, %p163
      %s165 = ssub.s32 %s27, %s39
      %p166 = scmp.eq.s32.totalorder %s165, 0
      %s168 = sadd.s32 %s167, 1
      %s169 = scalar_select %p166, %s167, %s168
      %p172 = pneg %p166
      %p173 = scmp.eq.s32.totalorder %s20, 7
      %p174 = por %p172, %p173
      %p175 = scmp.ne.s32.totalorder %s167, %s170
      %p176 = scmp.eq.s32.totalorder %s20, 0
      %p177 = por %p175, %p176
      %p178 = scmp.ne.s32.totalorder %s167, %s170
      %p179 = scmp.eq.s32.totalorder %s25, 7
      %p180 = por %p178, %p179
      %p181 = scmp.ne.s32.totalorder %s170, %s171
      %p182 = scmp.eq.s32.totalorder %s25, 0
      %p183 = por %p181, %p182
      %p184 = scmp.ne.s32.totalorder %s170, %s171
      %p185 = scmp.eq.s32.totalorder %s26, 7
      %p186 = por %p184, %p185
      %p188 = scmp.ne.s32.totalorder %s171, %s187
      %p189 = scmp.eq.s32.totalorder %s26, 0
      %p190 = por %p188, %p189
      %p191 = scmp.le.s32.totalorder 1, %s20
      %p192 = scmp.lt.s32.totalorder %s20, 9
      %p193 = pnand %p191, %p192
      %p194 = pneg %p193
      // Predicated region
      $region9: #{tpu_custom_call.1} parent=5 // pred_check
        _
      $region10: #{tpu_custom_call.1} parent=5 // pred_check_branch
        %196 = sbr.rel (%p193) target = $region12
      $region11: #{tpu_custom_call.1} parent=5 // pred_region
        %s197 = ssub.s32 %s20, 1
        // Predicated region
        $region13: #{tpu_custom_call.1} parent=11 // pred_check
          %p198 = pneg %p157
        $region14: #{tpu_custom_call.1} parent=11 // pred_check_branch
          %200 = sbr.rel (%p198) target = $region16
        $region15: #{tpu_custom_call.1} parent=11 // pred_region
          %s202 = ssub.s32 2048, 2048
          %203 = vsyncadd [#allocation9], %s202
          %s204 = sshll.u32 [#allocation10], 4
          %s205 = int_to_ptr.vmem [resolvable:$true] %s204
          %210 = dma.hbm_to_vmem [thread:$0]  %s4, 2048, %s205, [#allocation9], 128, 128, 8
        $region16: #{tpu_custom_call.1} parent=11 // pred_fallthru
          _
      $region12: #{tpu_custom_call.1} parent=5 // pred_fallthru
        _
      %p211 = scmp.lt.s32.totalorder %s20, 8
      // Predicated region
      $region17: #{tpu_custom_call.1} parent=5 // pred_check
        %p212 = pneg %p211
      $region18: #{tpu_custom_call.1} parent=5 // pred_check_branch
        %214 = sbr.rel (%p212) target = $region20
      $region19: #{tpu_custom_call.1} parent=5 // pred_region
        // Predicated region
        $region21: #{tpu_custom_call.1} parent=19 // pred_check
          %p215 = pneg %p52
        $region22: #{tpu_custom_call.1} parent=19 // pred_check_branch
          %217 = sbr.rel (%p215) target = $region24
        $region23: #{tpu_custom_call.1} parent=19 // pred_region
          %s218 = smul.u32 8, %s28
          %p219 = scmp.lt.s32.totalorder %s218, 31
          %s220 = scalar_select %p219, %s218, 31
          %s221 = smul.addr %s220, 8
          %s222 = scalar_lea.vmem %s0, %s221
          %s223 = smul.u32 8, %s28
        $region24: #{tpu_custom_call.1} parent=19 // pred_fallthru
          _
        // Predicated region
        $region25: #{tpu_custom_call.1} parent=19 // pred_check
          %p224 = pneg %p78
        $region26: #{tpu_custom_call.1} parent=19 // pred_check_branch
          %226 = sbr.rel (%p224) target = $region28
        $region27: #{tpu_custom_call.1} parent=19 // pred_region
          %s227 = sand.u32 %s68, 1
          %s228 = scalar_lea.sflag [#allocation6], %s227
          %s229 = sand.u32 %s68, 1
          %s230 = smul.addr %s229, 64
          %s231 = scalar_lea.vmem [#allocation5], %s230
          %s232 = smul.u32 8, %s28
          %s234 = ssub.s32 1024, 1024
          %235 = vsyncadd %s228, %s234
          %s236 = smul.addr %s232, 128
          %s237 = scalar_lea.hbm %s1, %s236
          %s238 = sshll.u32 %s231, 4
          %s239 = int_to_ptr.vmem [resolvable:$true] %s238
          %244 = dma.hbm_to_vmem [thread:$0]  %s237, 1024, %s239, %s228, 128, 128, 8
        $region28: #{tpu_custom_call.1} parent=19 // pred_fallthru
          _
        // Predicated region
        $region29: #{tpu_custom_call.1} parent=19 // pred_check
          %p245 = pneg %p104
        $region30: #{tpu_custom_call.1} parent=19 // pred_check_branch
          %247 = sbr.rel (%p245) target = $region32
        $region31: #{tpu_custom_call.1} parent=19 // pred_region
          %s248 = sand.u32 %s20, 1
          %s249 = scalar_lea.sflag [#allocation9], %s248
          %s250 = sand.u32 %s94, 1
          %s251 = smul.addr %s250, 64
          %s252 = scalar_lea.vmem [#allocation8], %s251
          %s253 = smul.u32 8, %s28
          %s255 = ssub.s32 1024, 1024
          %256 = vsyncadd %s249, %s255
          %s257 = smul.addr %s253, 128
          %s258 = scalar_lea.hbm %s2, %s257
          %s259 = sshll.u32 %s252, 4
          %s260 = int_to_ptr.vmem [resolvable:$true] %s259
          %265 = dma.hbm_to_vmem [thread:$0]  %s258, 1024, %s260, %s249, 128, 128, 8
        $region32: #{tpu_custom_call.1} parent=19 // pred_fallthru
          _
        // Predicated region
        $region33: #{tpu_custom_call.1} parent=19 // pred_check
          %p266 = pneg %p130
        $region34: #{tpu_custom_call.1} parent=19 // pred_check_branch
          %268 = sbr.rel (%p266) target = $region36
        $region35: #{tpu_custom_call.1} parent=19 // pred_region
          %s269 = smul.u32 8, %s28
          %p270 = scmp.lt.s32.totalorder %s269, 31
          %s271 = scalar_select %p270, %s269, 31
          %s272 = smul.addr %s271, 8
          %s273 = scalar_lea.vmem %s3, %s272
          %s274 = smul.u32 8, %s28
        $region36: #{tpu_custom_call.1} parent=19 // pred_fallthru
          _
      $region20: #{tpu_custom_call.1} parent=5 // pred_fallthru
        _
      %p275 = scmp.le.s32.totalorder 1, %s20
      %p276 = scmp.lt.s32.totalorder %s20, 9
      %p277 = pnand %p275, %p276
      %p278 = pneg %p277
      // Predicated region
      $region37: #{tpu_custom_call.1} parent=5 // pred_check
        _
      $region38: #{tpu_custom_call.1} parent=5 // pred_check_branch
        %280 = sbr.rel (%p277) target = $region40
      $region39: #{tpu_custom_call.1} parent=5 // pred_region
        %s281 = ssub.s32 %s20, 1
        %s282 = sand.u32 %s71, 1
        %s283 = scalar_lea.sflag [#allocation6], %s282
        %s284 = sand.u32 %s71, 1
        %s285 = smul.addr %s284, 64
        %s286 = scalar_lea.vmem [#allocation5], %s285
        // Predicated region
        $region41: #{tpu_custom_call.1} parent=39 // pred_check
          %p287 = pneg %p84
        $region42: #{tpu_custom_call.1} parent=39 // pred_check_branch
          %289 = sbr.rel (%p287) target = $region44
        $region43: #{tpu_custom_call.1} parent=39 // pred_region
          %290 = dma.done %s283, 1024
        $region44: #{tpu_custom_call.1} parent=39 // pred_fallthru
          _
        %s291 = sand.u32 %s25, 1
        %s292 = scalar_lea.sflag [#allocation9], %s291
        %s293 = sand.u32 %s97, 1
        %s294 = smul.addr %s293, 64
        %s295 = scalar_lea.vmem [#allocation8], %s294
        // Predicated region
        $region45: #{tpu_custom_call.1} parent=39 // pred_check
          %p296 = pneg %p110
        $region46: #{tpu_custom_call.1} parent=39 // pred_check_branch
          %298 = sbr.rel (%p296) target = $region48
        $region47: #{tpu_custom_call.1} parent=39 // pred_region
          %299 = dma.done %s292, 1024
        $region48: #{tpu_custom_call.1} parent=39 // pred_fallthru
          _
        // Predicated region
        $region49: #{tpu_custom_call.1} parent=39 // pred_check
          %p300 = pneg %p157
        $region50: #{tpu_custom_call.1} parent=39 // pred_check_branch
          %302 = sbr.rel (%p300) target = $region52
        $region51: #{tpu_custom_call.1} parent=39 // pred_region
          %303 = dma.done [#allocation9], 2048
        $region52: #{tpu_custom_call.1} parent=39 // pred_fallthru
          _
        %s304 = smul.u32 8, %s30
        %p305 = scmp.lt.s32.totalorder %s304, 31
        %s306 = scalar_select %p305, %s304, 31
        %s307 = smul.addr %s306, 8
        %s308 = scalar_lea.vmem %s0, %s307
        %p309 = pneg %p58
        %p310 = pneg %p55
        %s311 = sand.u32 %s71, 1
        %s312 = scalar_lea.sflag [#allocation6], %s311
        %s313 = sand.u32 %s71, 1
        %s314 = smul.addr %s313, 64
        %s315 = scalar_lea.vmem [#allocation5], %s314
        %p316 = pneg %p84
        %p317 = pneg %p81
        %s318 = sand.u32 %s25, 1
        %s319 = scalar_lea.sflag [#allocation9], %s318
        %s320 = sand.u32 %s97, 1
        %s321 = smul.addr %s320, 64
        %s322 = scalar_lea.vmem [#allocation8], %s321
        %p323 = pneg %p110
        %p324 = pneg %p107
        %s325 = smul.u32 8, %s30
        %p326 = scmp.lt.s32.totalorder %s325, 31
        %s327 = scalar_select %p326, %s325, 31
        %s328 = smul.addr %s327, 8
        %s329 = scalar_lea.vmem %s3, %s328
        %p330 = pneg %p136
        %p331 = pneg %p133
        %p332 = pneg %p157
        %p333 = pneg %p154
        %p334 = pneg %p183
        %p335 = pneg %p180
        %s336 = sand.u32 %s170, 1
        %s337 = scalar_lea.sflag [#allocation7], %s336
        %s338 = sand.u32 %s170, 1
        %s339 = smul.addr %s338, 128
        %s340 = scalar_lea.vmem [#allocation11], %s339
        %s341 = smul.u32 8, %s30
        %p342 = scmp.lt.s32.totalorder %s341, 31
        %s343 = scalar_select %p342, %s341, 31
        %s344 = smul.addr %s343, 8
        %s345 = scalar_lea.vmem %s0, %s344
        %s346 = smul.u32 8, %s30
        %s347 = smul.u32 8, %s30
        %s348 = smul.u32 8, %s30
        %s349 = smul.u32 8, %s30
        %p350 = scmp.lt.s32.totalorder %s349, 31
        %s351 = scalar_select %p350, %s349, 31
        %s352 = smul.addr %s351, 8
        %s353 = scalar_lea.vmem %s3, %s352
        %s354 = smul.u32 8, %s30
        %s355 = smul.u32 16, %s29
        %s356 = smul.u32 %s29, 128
        %p357 = scmp.eq.s32.totalorder %s30, 0
        // Predicated region
        $region53: #{tpu_custom_call.1} parent=39 // pred_check
          %p358 = pneg %p357
        $region54: #{tpu_custom_call.1} parent=39 // pred_check_branch
          %360 = sbr.rel (%p358) target = $region56
        $region55: #{tpu_custom_call.1} parent=39 // pred_region
          %361 = vst [vmem:[#allocation2] sm:$0x1] -1e+30
          %362 = vst [vmem:[#allocation3] sm:$0x1] 0.0
          %363 = vst [vmem:[#allocation4] sm:$0xff] 0.0
          %364 = vst [vmem:[#allocation4 + $0x8] sm:$0xff] 0.0
          %365 = vst [vmem:[#allocation4 + $0x10] sm:$0xff] 0.0
          %366 = vst [vmem:[#allocation4 + $0x18] sm:$0xff] 0.0
          %367 = vst [vmem:[#allocation4 + $0x20] sm:$0xff] 0.0
          %368 = vst [vmem:[#allocation4 + $0x28] sm:$0xff] 0.0
          %369 = vst [vmem:[#allocation4 + $0x30] sm:$0xff] 0.0
          %370 = vst [vmem:[#allocation4 + $0x38] sm:$0xff] 0.0
          %371 = vst [vmem:[#allocation4 + $0x40] sm:$0xff] 0.0
          %372 = vst [vmem:[#allocation4 + $0x48] sm:$0xff] 0.0
          %373 = vst [vmem:[#allocation4 + $0x50] sm:$0xff] 0.0
          %374 = vst [vmem:[#allocation4 + $0x58] sm:$0xff] 0.0
          %375 = vst [vmem:[#allocation4 + $0x60] sm:$0xff] 0.0
          %376 = vst [vmem:[#allocation4 + $0x68] sm:$0xff] 0.0
          %377 = vst [vmem:[#allocation4 + $0x70] sm:$0xff] 0.0
          %378 = vst [vmem:[#allocation4 + $0x78] sm:$0xff] 0.0
        $region56: #{tpu_custom_call.1} parent=39 // pred_fallthru
          _
        %v379 = vld [vmem:[%s345] sm:$0xff]
        %v380 = vld [vmem:[%s345 + $0x8] sm:$0xff]
        %v381 = vld [vmem:[%s345 + $0x10] sm:$0xff]
        %v382 = vld [vmem:[%s345 + $0x18] sm:$0xff]
        %v383 = vld [vmem:[%s345 + $0x20] sm:$0xff]
        %v384 = vld [vmem:[%s345 + $0x28] sm:$0xff]
        %v385 = vld [vmem:[%s345 + $0x30] sm:$0xff]
        %v386 = vld [vmem:[%s345 + $0x38] sm:$0xff]
        %v387 = vld [vmem:[%s286] sm:$0xff]
        %v388 = vld [vmem:[%s286 + $0x8] sm:$0xff]
        %v389 = vld [vmem:[%s286 + $0x10] sm:$0xff]
        %v390 = vld [vmem:[%s286 + $0x18] sm:$0xff]
        %v391 = vld [vmem:[%s286 + $0x20] sm:$0xff]
        %v392 = vld [vmem:[%s286 + $0x28] sm:$0xff]
        %v393 = vld [vmem:[%s286 + $0x30] sm:$0xff]
        %v394 = vld [vmem:[%s286 + $0x38] sm:$0xff]
        %v395 = vld [vmem:[%s295] sm:$0xff]
        %v396 = vld [vmem:[%s295 + $0x8] sm:$0xff]
        %v397 = vld [vmem:[%s295 + $0x10] sm:$0xff]
        %v398 = vld [vmem:[%s295 + $0x18] sm:$0xff]
        %v399 = vld [vmem:[%s295 + $0x20] sm:$0xff]
        %v400 = vld [vmem:[%s295 + $0x28] sm:$0xff]
        %v401 = vld [vmem:[%s295 + $0x30] sm:$0xff]
        %v402 = vld [vmem:[%s295 + $0x38] sm:$0xff]
        %v403 = vadd.f32 %v379, %v387
        %v404 = vadd.f32 %v380, %v388
        %v405 = vadd.f32 %v381, %v389
        %v406 = vadd.f32 %v382, %v390
        %v407 = vadd.f32 %v383, %v391
        %v408 = vadd.f32 %v384, %v392
        %v409 = vadd.f32 %v385, %v393
        %v410 = vadd.f32 %v386, %v394
        %v411 = vmul.f32 %v403, %v395
        %v412 = vmul.f32 %v404, %v396
        %v413 = vmul.f32 %v405, %v397
        %v414 = vmul.f32 %v406, %v398
        %v415 = vmul.f32 %v407, %v399
        %v416 = vmul.f32 %v408, %v400
        %v417 = vmul.f32 %v409, %v401
        %v418 = vmul.f32 %v410, %v402
        %419 = vadd.xlane.f32.xlu0 %v411
        %v420 = vpop.xlane.xlu0 %419
        %421 = vadd.xlane.f32.xlu0 %v412
        %v422 = vpop.xlane.xlu0 %421
        %423 = vadd.xlane.f32.xlu0 %v413
        %v424 = vpop.xlane.xlu0 %423
        %425 = vadd.xlane.f32.xlu0 %v414
        %v426 = vpop.xlane.xlu0 %425
        %427 = vadd.xlane.f32.xlu0 %v415
        %v428 = vpop.xlane.xlu0 %427
        %429 = vadd.xlane.f32.xlu0 %v416
        %v430 = vpop.xlane.xlu0 %429
        %431 = vadd.xlane.f32.xlu0 %v417
        %v432 = vpop.xlane.xlu0 %431
        %433 = vadd.xlane.f32.xlu0 %v418
        %v434 = vpop.xlane.xlu0 %433
        %v435 = vld [vmem:[%s353] sm:$0xff]
        %v436 = vld [vmem:[%s353 + $0x8] sm:$0xff]
        %v437 = vld [vmem:[%s353 + $0x10] sm:$0xff]
        %v438 = vld [vmem:[%s353 + $0x18] sm:$0xff]
        %v439 = vld [vmem:[%s353 + $0x20] sm:$0xff]
        %v440 = vld [vmem:[%s353 + $0x28] sm:$0xff]
        %v441 = vld [vmem:[%s353 + $0x30] sm:$0xff]
        %v442 = vld [vmem:[%s353 + $0x38] sm:$0xff]
        %v443 = vlaneseq
        %v444 = vand.u32 %v443, 127
        %v445 = vstv %s356
        %v446 = vadd.s32 %v444, %v445
        %447 = vset.pattern.permute.xlu0 0
        %448 = vperm.xlu0 %447, %v435
        %v449 = vpop.permute.xlu0 %448
        %450 = vset.pattern.permute.xlu0 0
        %451 = vperm.xlu0 %450, %v436
        %v452 = vpop.permute.xlu0 %451
        %453 = vset.pattern.permute.xlu0 0
        %454 = vperm.xlu0 %453, %v437
        %v455 = vpop.permute.xlu0 %454
        %456 = vset.pattern.permute.xlu0 0
        %457 = vperm.xlu0 %456, %v438
        %v458 = vpop.permute.xlu0 %457
        %459 = vset.pattern.permute.xlu0 0
        %460 = vperm.xlu0 %459, %v439
        %v461 = vpop.permute.xlu0 %460
        %462 = vset.pattern.permute.xlu0 0
        %463 = vperm.xlu0 %462, %v440
        %v464 = vpop.permute.xlu0 %463
        %465 = vset.pattern.permute.xlu0 0
        %466 = vperm.xlu0 %465, %v441
        %v467 = vpop.permute.xlu0 %466
        %468 = vset.pattern.permute.xlu0 0
        %469 = vperm.xlu0 %468, %v442
        %v470 = vpop.permute.xlu0 %469
        %vm471 = vcmp.eq.s32.totalorder %v446, %v449
        %vm472 = vcmp.eq.s32.totalorder %v446, %v452
        %vm473 = vcmp.eq.s32.totalorder %v446, %v455
        %vm474 = vcmp.eq.s32.totalorder %v446, %v458
        %vm475 = vcmp.eq.s32.totalorder %v446, %v461
        %vm476 = vcmp.eq.s32.totalorder %v446, %v464
        %vm477 = vcmp.eq.s32.totalorder %v446, %v467
        %vm478 = vcmp.eq.s32.totalorder %v446, %v470
        %v479 = vsel %vm471, 1, 0
        %v480 = vsel %vm472, 1, 0
        %v481 = vsel %vm473, 1, 0
        %v482 = vsel %vm474, 1, 0
        %v483 = vsel %vm475, 1, 0
        %v484 = vsel %vm476, 1, 0
        %v485 = vsel %vm477, 1, 0
        %v486 = vsel %vm478, 1, 0
        %v487 = vcvt.s32.f32 %v479
        %v488 = vcvt.s32.f32 %v480
        %v489 = vcvt.s32.f32 %v481
        %v490 = vcvt.s32.f32 %v482
        %v491 = vcvt.s32.f32 %v483
        %v492 = vcvt.s32.f32 %v484
        %v493 = vcvt.s32.f32 %v485
        %v494 = vcvt.s32.f32 %v486
        %v495 = vld [vmem:[#allocation2] sm:$0x1]
        %v496 = vsel %vm471, %v420, -1e+30
        %v497 = vsel %vm472, %v422, -1e+30
        %v498 = vsel %vm473, %v424, -1e+30
        %v499 = vsel %vm474, %v426, -1e+30
        %v500 = vsel %vm475, %v428, -1e+30
        %v501 = vsel %vm476, %v430, -1e+30
        %v502 = vsel %vm477, %v432, -1e+30
        %v503 = vsel %vm478, %v434, -1e+30
        %v504 = vmax.f32 %v496, %v500
        %v505 = vmax.f32 %v497, %v501
        %v506 = vmax.f32 %v498, %v502
        %v507 = vmax.f32 %v499, %v503
        %v508 = vmax.f32 %v504, %v505
        %v509 = vmax.f32 %v506, %v507
        %v510 = vmax.f32 %v508, %v509
        %v511 = vrot.slane %v510, 4
        %v512 = vmax.f32 %v510, %v511
        %v513 = vrot.slane %v512, 2
        %v514 = vmax.f32 %v512, %v513
        %v515 = vrot.slane %v514, 1
        %v516 = vmax.f32 %v514, %v515
        %v517 = vmax.f32 %v495, %v516
        %518 = vst [vmem:[#allocation2] sm:$0x1] %v517
        %v520 = vlaneseq
        %v521 = vshrl.u32 %v520, 7
        %v522 = vsub.s32 0, %v521
        %v523 = vrot.slane %v517, %v522
        %v525 = vmul.f32 %v487, %v523
        %v526 = vmul.f32 %v488, %v523
        %v527 = vmul.f32 %v489, %v523
        %v528 = vmul.f32 %v490, %v523
        %v529 = vmul.f32 %v491, %v523
        %v530 = vmul.f32 %v492, %v523
        %v531 = vmul.f32 %v493, %v523
        %v532 = vmul.f32 %v494, %v523
        %533 = vadd.xlane.f32.xlu0 %v525
        %v534 = vpop.xlane.xlu0 %533
        %535 = vadd.xlane.f32.xlu0 %v526
        %v536 = vpop.xlane.xlu0 %535
        %537 = vadd.xlane.f32.xlu0 %v527
        %v538 = vpop.xlane.xlu0 %537
        %539 = vadd.xlane.f32.xlu0 %v528
        %v540 = vpop.xlane.xlu0 %539
        %541 = vadd.xlane.f32.xlu0 %v529
        %v542 = vpop.xlane.xlu0 %541
        %543 = vadd.xlane.f32.xlu0 %v530
        %v544 = vpop.xlane.xlu0 %543
        %545 = vadd.xlane.f32.xlu0 %v531
        %v546 = vpop.xlane.xlu0 %545
        %547 = vadd.xlane.f32.xlu0 %v532
        %v548 = vpop.xlane.xlu0 %547
        %vm549 = vcmp.ge.s32.totalorder %v435, %v445
        %vm550 = vcmp.ge.s32.totalorder %v436, %v445
        %vm551 = vcmp.ge.s32.totalorder %v437, %v445
        %vm552 = vcmp.ge.s32.totalorder %v438, %v445
        %vm553 = vcmp.ge.s32.totalorder %v439, %v445
        %vm554 = vcmp.ge.s32.totalorder %v440, %v445
        %vm555 = vcmp.ge.s32.totalorder %v441, %v445
        %vm556 = vcmp.ge.s32.totalorder %v442, %v445
        %s557 = sadd.s32 %s356, 128
        %v558 = vstv %s557
        %vm559 = vcmp.lt.s32.totalorder %v435, %v558
        %vm560 = vcmp.lt.s32.totalorder %v436, %v558
        %vm561 = vcmp.lt.s32.totalorder %v437, %v558
        %vm562 = vcmp.lt.s32.totalorder %v438, %v558
        %vm563 = vcmp.lt.s32.totalorder %v439, %v558
        %vm564 = vcmp.lt.s32.totalorder %v440, %v558
        %vm565 = vcmp.lt.s32.totalorder %v441, %v558
        %vm566 = vcmp.lt.s32.totalorder %v442, %v558
        %vm567 = vmand %vm549, %vm559
        %vm568 = vmand %vm550, %vm560
        %vm569 = vmand %vm551, %vm561
        %vm570 = vmand %vm552, %vm562
        %vm571 = vmand %vm553, %vm563
        %vm572 = vmand %vm554, %vm564
        %vm573 = vmand %vm555, %vm565
        %vm574 = vmand %vm556, %vm566
        %v575 = vsub.f32 %v420, %v534
        %v576 = vsub.f32 %v422, %v536
        %v577 = vsub.f32 %v424, %v538
        %v578 = vsub.f32 %v426, %v540
        %v579 = vsub.f32 %v428, %v542
        %v580 = vsub.f32 %v430, %v544
        %v581 = vsub.f32 %v432, %v546
        %v582 = vsub.f32 %v434, %v548
        %v583 = vsel %vm567, %v575, -1e+30
        %v584 = vsel %vm568, %v576, -1e+30
        %v585 = vsel %vm569, %v577, -1e+30
        %v586 = vsel %vm570, %v578, -1e+30
        %v587 = vsel %vm571, %v579, -1e+30
        %v588 = vsel %vm572, %v580, -1e+30
        %v589 = vsel %vm573, %v581, -1e+30
        %v590 = vsel %vm574, %v582, -1e+30
        %v591 = vmul.f32 %v583, 1.442695
        %v592 = vpow.pop %v591
        %v593 = vmul.f32 %v584, 1.442695
        %v594 = vpow.pop %v593
        %v595 = vmul.f32 %v585, 1.442695
        %v596 = vpow.pop %v595
        %v597 = vmul.f32 %v586, 1.442695
        %v598 = vpow.pop %v597
        %v599 = vmul.f32 %v587, 1.442695
        %v600 = vpow.pop %v599
        %v601 = vmul.f32 %v588, 1.442695
        %v602 = vpow.pop %v601
        %v603 = vmul.f32 %v589, 1.442695
        %v604 = vpow.pop %v603
        %v605 = vmul.f32 %v590, 1.442695
        %v606 = vpow.pop %v605
        %v607 = vsub.f32 %v495, %v517
        %v608 = vmul.f32 %v607, 1.442695
        %v609 = vpow.pop %v608
        %610 = vxpose.xlu0.b32.start [1/16] %v592, 128
        %611 = vxpose.xlu0.b32.cont [2/16] %v594, 128
        %612 = vxpose.xlu0.b32.cont [3/16] %v596, 128
        %613 = vxpose.xlu0.b32.cont [4/16] %v598, 128
        %614 = vxpose.xlu0.b32.cont [5/16] %v600, 128
        %615 = vxpose.xlu0.b32.cont [6/16] %v602, 128
        %616 = vxpose.xlu0.b32.cont [7/16] %v604, 128
        %617 = vxpose.xlu0.b32.cont [8/16] %v606, 128
        %618 = vxpose.xlu0.b32.cont [9/16] 0.0, 128
        %619 = vxpose.xlu0.b32.cont [10/16] 0.0, 128
        %620 = vxpose.xlu0.b32.cont [11/16] 0.0, 128
        %621 = vxpose.xlu0.b32.cont [12/16] 0.0, 128
        %622 = vxpose.xlu0.b32.cont [13/16] 0.0, 128
        %623 = vxpose.xlu0.b32.cont [14/16] 0.0, 128
        %624 = vxpose.xlu0.b32.cont [15/16] 0.0, 128
        %625 = vxpose.xlu0.b32.end [16/16] 0.0, 128
        %v626 = vpop.trf.xlu0
        %v627 = vpop.trf.xlu0
        %v628 = vpop.trf.xlu0
        %v629 = vpop.trf.xlu0
        %v630 = vpop.trf.xlu0
        %v631 = vpop.trf.xlu0
        %v632 = vpop.trf.xlu0
        %v633 = vpop.trf.xlu0
        %v634 = vpop.trf.xlu0
        %v635 = vpop.trf.xlu0
        %v636 = vpop.trf.xlu0
        %v637 = vpop.trf.xlu0
        %v638 = vpop.trf.xlu0
        %v639 = vpop.trf.xlu0
        %v640 = vpop.trf.xlu0
        %v641 = vpop.trf.xlu0
        %vm642 = vcmask 523264
        %v644 = vsel %vm642, %v626, 0
        %646 = vmatprep.subr.mxu0 0.0
        %647 = vmatpush1.msra.mxu0 0.0
        %648 = vmatprep.subr.mxu0 0.0
        %649 = vmatpush1.msra.mxu0 0.0
        %650 = vmatprep.subr.mxu0 0.0
        %651 = vmatpush1.msra.mxu0 0.0
        %652 = vmatprep.subr.mxu0 0.0
        %653 = vmatpush1.msra.mxu0 0.0
        %654 = vmatprep.subr.mxu0 0.0
        %655 = vmatpush1.msra.mxu0 0.0
        %656 = vmatprep.subr.mxu0 0.0
        %657 = vmatpush1.msra.mxu0 0.0
        %658 = vmatprep.subr.mxu0 0.0
        %659 = vmatpush1.msra.mxu0 0.0
        %660 = vmatprep.subr.mxu0 0.0
        %661 = vmatpush1.msra.mxu0 0.0
        %662 = vmatprep.subr.mxu0 0.0
        %663 = vmatpush1.msra.mxu0 %v494
        %664 = vmatprep.subr.mxu0 0.0
        %665 = vmatpush1.msra.mxu0 %v493
        %666 = vmatprep.subr.mxu0 0.0
        %667 = vmatpush1.msra.mxu0 %v492
        %668 = vmatprep.subr.mxu0 0.0
        %669 = vmatpush1.msra.mxu0 %v491
        %670 = vmatprep.subr.mxu0 0.0
        %671 = vmatpush1.msra.mxu0 %v490
        %672 = vmatprep.subr.mxu0 0.0
        %673 = vmatpush1.msra.mxu0 %v489
        %674 = vmatprep.subr.mxu0 0.0
        %675 = vmatpush1.msra.mxu0 %v488
        %676 = vmatprep.subr.mxu0 0.0
        %677 = vmatpush1.msra.mxu0 %v487
        %678 = vmatprep.subr.mxu0 0.0
        %679 = vmatpush2.msra.mxu0 0.0
        %680 = vmatprep.subr.mxu0 0.0
        %681 = vmatpush2.msra.mxu0 0.0
        %682 = vmatprep.subr.mxu0 0.0
        %683 = vmatpush2.msra.mxu0 0.0
        %684 = vmatprep.subr.mxu0 0.0
        %685 = vmatpush2.msra.mxu0 0.0
        %686 = vmatprep.subr.mxu0 0.0
        %687 = vmatpush2.msra.mxu0 0.0
        %688 = vmatprep.subr.mxu0 0.0
        %689 = vmatpush2.msra.mxu0 0.0
        %690 = vmatprep.subr.mxu0 0.0
        %691 = vmatpush2.msra.mxu0 0.0
        %692 = vmatprep.subr.mxu0 0.0
        %693 = vmatpush2.msra.mxu0 0.0
        %694 = vmatprep.subr.mxu0 0.0
        %695 = vmatpush2.msra.mxu0 0.0
        %696 = vmatprep.subr.mxu0 0.0
        %697 = vmatpush2.msra.mxu0 0.0
        %698 = vmatprep.subr.mxu0 0.0
        %699 = vmatpush2.msra.mxu0 0.0
        %700 = vmatprep.subr.mxu0 0.0
        %701 = vmatpush2.msra.mxu0 0.0
        %702 = vmatprep.subr.mxu0 0.0
        %703 = vmatpush2.msra.mxu0 0.0
        %704 = vmatprep.subr.mxu0 0.0
        %705 = vmatpush2.msra.mxu0 0.0
        %706 = vmatprep.subr.mxu0 0.0
        %707 = vmatpush2.msra.mxu0 0.0
        %708 = vmatprep.subr.mxu0 0.0
        %709 = vmatpush2.msra.mxu0 0.0
        %710 = vmatprep.mubr.f32.mxu0 0.0
        %711 = vmatmul.mubr.f32.gmra.mxu0 %v644
        %v712 = vpop.f32.mrf.mxu0
        %v713 = vadd.f32 0.0, %v712
        %v714 = vpop.f32.mrf.mxu0
        %715 = vdwg.mxu0
        %v716 = vld [vmem:[#allocation3] sm:$0x1]
        %v717 = vmul.f32 %v609, %v716
        %v718 = vadd.f32 %v717, %v713
        %719 = vst [vmem:[#allocation3] sm:$0x1] %v718
        %721 = vset.pattern.permute.xlu0 0
        %722 = vperm.xlu0 %721, %v592
        %v723 = vpop.permute.xlu0 %722
        %726 = vset.pattern.permute.xlu0 0
        %727 = vperm.xlu0 %726, %v594
        %v728 = vpop.permute.xlu0 %727
        %731 = vset.pattern.permute.xlu0 0
        %732 = vperm.xlu0 %731, %v596
        %v733 = vpop.permute.xlu0 %732
        %736 = vset.pattern.permute.xlu0 0
        %737 = vperm.xlu0 %736, %v598
        %v738 = vpop.permute.xlu0 %737
        %741 = vset.pattern.permute.xlu0 0
        %742 = vperm.xlu0 %741, %v600
        %v743 = vpop.permute.xlu0 %742
        %746 = vset.pattern.permute.xlu0 0
        %747 = vperm.xlu0 %746, %v602
        %v748 = vpop.permute.xlu0 %747
        %751 = vset.pattern.permute.xlu0 0
        %752 = vperm.xlu0 %751, %v604
        %v753 = vpop.permute.xlu0 %752
        %756 = vset.pattern.permute.xlu0 0
        %757 = vperm.xlu0 %756, %v606
        %v758 = vpop.permute.xlu0 %757
        %v760 = vmul.f32 %v403, %v723
        %v761 = vmul.f32 %v404, %v728
        %v762 = vmul.f32 %v405, %v733
        %v763 = vmul.f32 %v406, %v738
        %v764 = vmul.f32 %v407, %v743
        %v765 = vmul.f32 %v408, %v748
        %v766 = vmul.f32 %v409, %v753
        %v767 = vmul.f32 %v410, %v758
        %768 = vxpose.xlu0.b32.start [1/16] %v760, 128
        %769 = vxpose.xlu0.b32.cont [2/16] %v761, 128
        %770 = vxpose.xlu0.b32.cont [3/16] %v762, 128
        %771 = vxpose.xlu0.b32.cont [4/16] %v763, 128
        %772 = vxpose.xlu0.b32.cont [5/16] %v764, 128
        %773 = vxpose.xlu0.b32.cont [6/16] %v765, 128
        %774 = vxpose.xlu0.b32.cont [7/16] %v766, 128
        %775 = vxpose.xlu0.b32.cont [8/16] %v767, 128
        %776 = vxpose.xlu0.b32.cont [9/16] 0.0, 128
        %777 = vxpose.xlu0.b32.cont [10/16] 0.0, 128
        %778 = vxpose.xlu0.b32.cont [11/16] 0.0, 128
        %779 = vxpose.xlu0.b32.cont [12/16] 0.0, 128
        %780 = vxpose.xlu0.b32.cont [13/16] 0.0, 128
        %781 = vxpose.xlu0.b32.cont [14/16] 0.0, 128
        %782 = vxpose.xlu0.b32.cont [15/16] 0.0, 128
        %783 = vxpose.xlu0.b32.end [16/16] 0.0, 128
        %v784 = vpop.trf.xlu0
        %v785 = vpop.trf.xlu0
        %v786 = vpop.trf.xlu0
        %v787 = vpop.trf.xlu0
        %v788 = vpop.trf.xlu0
        %v789 = vpop.trf.xlu0
        %v790 = vpop.trf.xlu0
        %v791 = vpop.trf.xlu0
        %v792 = vpop.trf.xlu0
        %v793 = vpop.trf.xlu0
        %v794 = vpop.trf.xlu0
        %v795 = vpop.trf.xlu0
        %v796 = vpop.trf.xlu0
        %v797 = vpop.trf.xlu0
        %v798 = vpop.trf.xlu0
        %v799 = vpop.trf.xlu0
        %v801 = vsel %vm642, %v784, 0
        %v804 = vsel %vm642, %v785, 0
        %v807 = vsel %vm642, %v786, 0
        %v810 = vsel %vm642, %v787, 0
        %v813 = vsel %vm642, %v788, 0
        %v816 = vsel %vm642, %v789, 0
        %v819 = vsel %vm642, %v790, 0
        %v822 = vsel %vm642, %v791, 0
        %v825 = vsel %vm642, %v792, 0
        %v828 = vsel %vm642, %v793, 0
        %v831 = vsel %vm642, %v794, 0
        %v834 = vsel %vm642, %v795, 0
        %v837 = vsel %vm642, %v796, 0
        %v840 = vsel %vm642, %v797, 0
        %v843 = vsel %vm642, %v798, 0
        %v846 = vsel %vm642, %v799, 0
        %848 = vmatprep.subr.mxu0 0.0
        %849 = vmatpush1.msra.mxu0 0.0
        %850 = vmatprep.subr.mxu0 0.0
        %851 = vmatpush1.msra.mxu0 0.0
        %852 = vmatprep.subr.mxu0 0.0
        %853 = vmatpush1.msra.mxu0 0.0
        %854 = vmatprep.subr.mxu0 0.0
        %855 = vmatpush1.msra.mxu0 0.0
        %856 = vmatprep.subr.mxu0 0.0
        %857 = vmatpush1.msra.mxu0 0.0
        %858 = vmatprep.subr.mxu0 0.0
        %859 = vmatpush1.msra.mxu0 0.0
        %860 = vmatprep.subr.mxu0 0.0
        %861 = vmatpush1.msra.mxu0 0.0
        %862 = vmatprep.subr.mxu0 0.0
        %863 = vmatpush1.msra.mxu0 0.0
        %864 = vmatprep.subr.mxu0 0.0
        %865 = vmatpush1.msra.mxu0 %v494
        %866 = vmatprep.subr.mxu0 0.0
        %867 = vmatpush1.msra.mxu0 %v493
        %868 = vmatprep.subr.mxu0 0.0
        %869 = vmatpush1.msra.mxu0 %v492
        %870 = vmatprep.subr.mxu0 0.0
        %871 = vmatpush1.msra.mxu0 %v491
        %872 = vmatprep.subr.mxu0 0.0
        %873 = vmatpush1.msra.mxu0 %v490
        %874 = vmatprep.subr.mxu0 0.0
        %875 = vmatpush1.msra.mxu0 %v489
        %876 = vmatprep.subr.mxu0 0.0
        %877 = vmatpush1.msra.mxu0 %v488
        %878 = vmatprep.subr.mxu0 0.0
        %879 = vmatpush1.msra.mxu0 %v487
        %880 = vmatprep.subr.mxu0 0.0
        %881 = vmatpush2.msra.mxu0 0.0
        %882 = vmatprep.subr.mxu0 0.0
        %883 = vmatpush2.msra.mxu0 0.0
        %884 = vmatprep.subr.mxu0 0.0
        %885 = vmatpush2.msra.mxu0 0.0
        %886 = vmatprep.subr.mxu0 0.0
        %887 = vmatpush2.msra.mxu0 0.0
        %888 = vmatprep.subr.mxu0 0.0
        %889 = vmatpush2.msra.mxu0 0.0
        %890 = vmatprep.subr.mxu0 0.0
        %891 = vmatpush2.msra.mxu0 0.0
        %892 = vmatprep.subr.mxu0 0.0
        %893 = vmatpush2.msra.mxu0 0.0
        %894 = vmatprep.subr.mxu0 0.0
        %895 = vmatpush2.msra.mxu0 0.0
        %896 = vmatprep.subr.mxu0 0.0
        %897 = vmatpush2.msra.mxu0 0.0
        %898 = vmatprep.subr.mxu0 0.0
        %899 = vmatpush2.msra.mxu0 0.0
        %900 = vmatprep.subr.mxu0 0.0
        %901 = vmatpush2.msra.mxu0 0.0
        %902 = vmatprep.subr.mxu0 0.0
        %903 = vmatpush2.msra.mxu0 0.0
        %904 = vmatprep.subr.mxu0 0.0
        %905 = vmatpush2.msra.mxu0 0.0
        %906 = vmatprep.subr.mxu0 0.0
        %907 = vmatpush2.msra.mxu0 0.0
        %908 = vmatprep.subr.mxu0 0.0
        %909 = vmatpush2.msra.mxu0 0.0
        %910 = vmatprep.subr.mxu0 0.0
        %911 = vmatpush2.msra.mxu0 0.0
        %912 = vmatprep.mubr.f32.mxu0 0.0
        %913 = vmatmul.mubr.f32.gmra.mxu0 %v801
        %v914 = vpop.f32.mrf.mxu0
        %v915 = vadd.f32 0.0, %v914
        %v916 = vpop.f32.mrf.mxu0
        %917 = vmatprep.mubr.f32.mxu0 0.0
        %918 = vmatmul.mubr.f32.gmra.mxu0 %v804
        %v919 = vpop.f32.mrf.mxu0
        %v920 = vadd.f32 0.0, %v919
        %v921 = vpop.f32.mrf.mxu0
        %922 = vmatprep.mubr.f32.mxu0 0.0
        %923 = vmatmul.mubr.f32.gmra.mxu0 %v807
        %v924 = vpop.f32.mrf.mxu0
        %v925 = vadd.f32 0.0, %v924
        %v926 = vpop.f32.mrf.mxu0
        %927 = vmatprep.mubr.f32.mxu0 0.0
        %928 = vmatmul.mubr.f32.gmra.mxu0 %v810
        %v929 = vpop.f32.mrf.mxu0
        %v930 = vadd.f32 0.0, %v929
        %v931 = vpop.f32.mrf.mxu0
        %932 = vmatprep.mubr.f32.mxu0 0.0
        %933 = vmatmul.mubr.f32.gmra.mxu0 %v813
        %v934 = vpop.f32.mrf.mxu0
        %v935 = vadd.f32 0.0, %v934
        %v936 = vpop.f32.mrf.mxu0
        %937 = vmatprep.mubr.f32.mxu0 0.0
        %938 = vmatmul.mubr.f32.gmra.mxu0 %v816
        %v939 = vpop.f32.mrf.mxu0
        %v940 = vadd.f32 0.0, %v939
        %v941 = vpop.f32.mrf.mxu0
        %942 = vmatprep.mubr.f32.mxu0 0.0
        %943 = vmatmul.mubr.f32.gmra.mxu0 %v819
        %v944 = vpop.f32.mrf.mxu0
        %v945 = vadd.f32 0.0, %v944
        %v946 = vpop.f32.mrf.mxu0
        %947 = vmatprep.mubr.f32.mxu0 0.0
        %948 = vmatmul.mubr.f32.gmra.mxu0 %v822
        %v949 = vpop.f32.mrf.mxu0
        %v950 = vadd.f32 0.0, %v949
        %v951 = vpop.f32.mrf.mxu0
        %952 = vmatprep.mubr.f32.mxu0 0.0
        %953 = vmatmul.mubr.f32.gmra.mxu0 %v825
        %v954 = vpop.f32.mrf.mxu0
        %v955 = vadd.f32 0.0, %v954
        %v956 = vpop.f32.mrf.mxu0
        %957 = vmatprep.mubr.f32.mxu0 0.0
        %958 = vmatmul.mubr.f32.gmra.mxu0 %v828
        %v959 = vpop.f32.mrf.mxu0
        %v960 = vadd.f32 0.0, %v959
        %v961 = vpop.f32.mrf.mxu0
        %962 = vmatprep.mubr.f32.mxu0 0.0
        %963 = vmatmul.mubr.f32.gmra.mxu0 %v831
        %v964 = vpop.f32.mrf.mxu0
        %v965 = vadd.f32 0.0, %v964
        %v966 = vpop.f32.mrf.mxu0
        %967 = vmatprep.mubr.f32.mxu0 0.0
        %968 = vmatmul.mubr.f32.gmra.mxu0 %v834
        %v969 = vpop.f32.mrf.mxu0
        %v970 = vadd.f32 0.0, %v969
        %v971 = vpop.f32.mrf.mxu0
        %972 = vmatprep.mubr.f32.mxu0 0.0
        %973 = vmatmul.mubr.f32.gmra.mxu0 %v837
        %v974 = vpop.f32.mrf.mxu0
        %v975 = vadd.f32 0.0, %v974
        %v976 = vpop.f32.mrf.mxu0
        %977 = vmatprep.mubr.f32.mxu0 0.0
        %978 = vmatmul.mubr.f32.gmra.mxu0 %v840
        %v979 = vpop.f32.mrf.mxu0
        %v980 = vadd.f32 0.0, %v979
        %v981 = vpop.f32.mrf.mxu0
        %982 = vmatprep.mubr.f32.mxu0 0.0
        %983 = vmatmul.mubr.f32.gmra.mxu0 %v843
        %v984 = vpop.f32.mrf.mxu0
        %v985 = vadd.f32 0.0, %v984
        %v986 = vpop.f32.mrf.mxu0
        %987 = vmatprep.mubr.f32.mxu0 0.0
        %988 = vmatmul.mubr.f32.gmra.mxu0 %v846
        %v989 = vpop.f32.mrf.mxu0
        %v990 = vadd.f32 0.0, %v989
        %v991 = vpop.f32.mrf.mxu0
        %992 = vdwg.mxu0
        %v993 = vld [vmem:[#allocation4] sm:$0xff]
        %v994 = vld [vmem:[#allocation4 + $0x8] sm:$0xff]
        %v995 = vld [vmem:[#allocation4 + $0x10] sm:$0xff]
        %v996 = vld [vmem:[#allocation4 + $0x18] sm:$0xff]
        %v997 = vld [vmem:[#allocation4 + $0x20] sm:$0xff]
        %v998 = vld [vmem:[#allocation4 + $0x28] sm:$0xff]
        %v999 = vld [vmem:[#allocation4 + $0x30] sm:$0xff]
        %v1000 = vld [vmem:[#allocation4 + $0x38] sm:$0xff]
        %v1001 = vld [vmem:[#allocation4 + $0x40] sm:$0xff]
        %v1002 = vld [vmem:[#allocation4 + $0x48] sm:$0xff]
        %v1003 = vld [vmem:[#allocation4 + $0x50] sm:$0xff]
        %v1004 = vld [vmem:[#allocation4 + $0x58] sm:$0xff]
        %v1005 = vld [vmem:[#allocation4 + $0x60] sm:$0xff]
        %v1006 = vld [vmem:[#allocation4 + $0x68] sm:$0xff]
        %v1007 = vld [vmem:[#allocation4 + $0x70] sm:$0xff]
        %v1008 = vld [vmem:[#allocation4 + $0x78] sm:$0xff]
        %v1010 = vlaneseq
        %v1011 = vshrl.u32 %v1010, 7
        %v1012 = vsub.s32 0, %v1011
        %v1013 = vrot.slane %v609, %v1012
        %v1015 = vmul.f32 %v1013, %v993
        %v1016 = vmul.f32 %v1013, %v994
        %v1017 = vmul.f32 %v1013, %v995
        %v1018 = vmul.f32 %v1013, %v996
        %v1019 = vmul.f32 %v1013, %v997
        %v1020 = vmul.f32 %v1013, %v998
        %v1021 = vmul.f32 %v1013, %v999
        %v1022 = vmul.f32 %v1013, %v1000
        %v1023 = vmul.f32 %v1013, %v1001
        %v1024 = vmul.f32 %v1013, %v1002
        %v1025 = vmul.f32 %v1013, %v1003
        %v1026 = vmul.f32 %v1013, %v1004
        %v1027 = vmul.f32 %v1013, %v1005
        %v1028 = vmul.f32 %v1013, %v1006
        %v1029 = vmul.f32 %v1013, %v1007
        %v1030 = vmul.f32 %v1013, %v1008
        %v1031 = vadd.f32 %v1015, %v915
        %v1032 = vadd.f32 %v1016, %v920
        %v1033 = vadd.f32 %v1017, %v925
        %v1034 = vadd.f32 %v1018, %v930
        %v1035 = vadd.f32 %v1019, %v935
        %v1036 = vadd.f32 %v1020, %v940
        %v1037 = vadd.f32 %v1021, %v945
        %v1038 = vadd.f32 %v1022, %v950
        %v1039 = vadd.f32 %v1023, %v955
        %v1040 = vadd.f32 %v1024, %v960
        %v1041 = vadd.f32 %v1025, %v965
        %v1042 = vadd.f32 %v1026, %v970
        %v1043 = vadd.f32 %v1027, %v975
        %v1044 = vadd.f32 %v1028, %v980
        %v1045 = vadd.f32 %v1029, %v985
        %v1046 = vadd.f32 %v1030, %v990
        %1047 = vst [vmem:[#allocation4] sm:$0xff] %v1031
        %1048 = vst [vmem:[#allocation4 + $0x8] sm:$0xff] %v1032
        %1049 = vst [vmem:[#allocation4 + $0x10] sm:$0xff] %v1033
        %1050 = vst [vmem:[#allocation4 + $0x18] sm:$0xff] %v1034
        %1051 = vst [vmem:[#allocation4 + $0x20] sm:$0xff] %v1035
        %1052 = vst [vmem:[#allocation4 + $0x28] sm:$0xff] %v1036
        %1053 = vst [vmem:[#allocation4 + $0x30] sm:$0xff] %v1037
        %1054 = vst [vmem:[#allocation4 + $0x38] sm:$0xff] %v1038
        %1055 = vst [vmem:[#allocation4 + $0x40] sm:$0xff] %v1039
        %1056 = vst [vmem:[#allocation4 + $0x48] sm:$0xff] %v1040
        %1057 = vst [vmem:[#allocation4 + $0x50] sm:$0xff] %v1041
        %1058 = vst [vmem:[#allocation4 + $0x58] sm:$0xff] %v1042
        %1059 = vst [vmem:[#allocation4 + $0x60] sm:$0xff] %v1043
        %1060 = vst [vmem:[#allocation4 + $0x68] sm:$0xff] %v1044
        %1061 = vst [vmem:[#allocation4 + $0x70] sm:$0xff] %v1045
        %1062 = vst [vmem:[#allocation4 + $0x78] sm:$0xff] %v1046
        %p1063 = scmp.eq.s32.totalorder %s30, 3
        // Predicated region
        $region57: #{tpu_custom_call.1} parent=39 // pred_check
          %p1064 = pneg %p1063
        $region58: #{tpu_custom_call.1} parent=39 // pred_check_branch
          %1066 = sbr.rel (%p1064) target = $region60
        $region59: #{tpu_custom_call.1} parent=39 // pred_region
          %v1067 = vld [vmem:[#allocation3] sm:$0x1]
          %vm1068 = vcmp.gt.f32.partialorder %v1067, 0.0
          %v1069 = vrcp.pop %v1067
          %v1070 = vsel %vm1068, %v1069, 0.0
          %v1071 = vld [vmem:[#allocation4] sm:$0xff]
          %v1072 = vld [vmem:[#allocation4 + $0x8] sm:$0xff]
          %v1073 = vld [vmem:[#allocation4 + $0x10] sm:$0xff]
          %v1074 = vld [vmem:[#allocation4 + $0x18] sm:$0xff]
          %v1075 = vld [vmem:[#allocation4 + $0x20] sm:$0xff]
          %v1076 = vld [vmem:[#allocation4 + $0x28] sm:$0xff]
          %v1077 = vld [vmem:[#allocation4 + $0x30] sm:$0xff]
          %v1078 = vld [vmem:[#allocation4 + $0x38] sm:$0xff]
          %v1079 = vld [vmem:[#allocation4 + $0x40] sm:$0xff]
          %v1080 = vld [vmem:[#allocation4 + $0x48] sm:$0xff]
          %v1081 = vld [vmem:[#allocation4 + $0x50] sm:$0xff]
          %v1082 = vld [vmem:[#allocation4 + $0x58] sm:$0xff]
          %v1083 = vld [vmem:[#allocation4 + $0x60] sm:$0xff]
          %v1084 = vld [vmem:[#allocation4 + $0x68] sm:$0xff]
          %v1085 = vld [vmem:[#allocation4 + $0x70] sm:$0xff]
          %v1086 = vld [vmem:[#allocation4 + $0x78] sm:$0xff]
          %v1088 = vlaneseq
          %v1089 = vshrl.u32 %v1088, 7
          %v1090 = vsub.s32 0, %v1089
          %v1091 = vrot.slane %v1070, %v1090
          %v1093 = vmul.f32 %v1071, %v1091
          %v1094 = vmul.f32 %v1072, %v1091
          %v1095 = vmul.f32 %v1073, %v1091
          %v1096 = vmul.f32 %v1074, %v1091
          %v1097 = vmul.f32 %v1075, %v1091
          %v1098 = vmul.f32 %v1076, %v1091
          %v1099 = vmul.f32 %v1077, %v1091
          %v1100 = vmul.f32 %v1078, %v1091
          %v1101 = vmul.f32 %v1079, %v1091
          %v1102 = vmul.f32 %v1080, %v1091
          %v1103 = vmul.f32 %v1081, %v1091
          %v1104 = vmul.f32 %v1082, %v1091
          %v1105 = vmul.f32 %v1083, %v1091
          %v1106 = vmul.f32 %v1084, %v1091
          %v1107 = vmul.f32 %v1085, %v1091
          %v1108 = vmul.f32 %v1086, %v1091
          %v1109 = vld [vmem:[#allocation10] sm:$0xff]
          %v1110 = vld [vmem:[#allocation10 + $0x8] sm:$0xff]
          %v1111 = vld [vmem:[#allocation10 + $0x10] sm:$0xff]
          %v1112 = vld [vmem:[#allocation10 + $0x18] sm:$0xff]
          %v1113 = vld [vmem:[#allocation10 + $0x20] sm:$0xff]
          %v1114 = vld [vmem:[#allocation10 + $0x28] sm:$0xff]
          %v1115 = vld [vmem:[#allocation10 + $0x30] sm:$0xff]
          %v1116 = vld [vmem:[#allocation10 + $0x38] sm:$0xff]
          %v1117 = vld [vmem:[#allocation10 + $0x40] sm:$0xff]
          %v1118 = vld [vmem:[#allocation10 + $0x48] sm:$0xff]
          %v1119 = vld [vmem:[#allocation10 + $0x50] sm:$0xff]
          %v1120 = vld [vmem:[#allocation10 + $0x58] sm:$0xff]
          %v1121 = vld [vmem:[#allocation10 + $0x60] sm:$0xff]
          %v1122 = vld [vmem:[#allocation10 + $0x68] sm:$0xff]
          %v1123 = vld [vmem:[#allocation10 + $0x70] sm:$0xff]
          %v1124 = vld [vmem:[#allocation10 + $0x78] sm:$0xff]
          %1125 = vxpose.xlu0.b32.start [1/16] %v1093, 128
          %1126 = vxpose.xlu0.b32.cont [2/16] %v1094, 128
          %1127 = vxpose.xlu0.b32.cont [3/16] %v1095, 128
          %1128 = vxpose.xlu0.b32.cont [4/16] %v1096, 128
          %1129 = vxpose.xlu0.b32.cont [5/16] %v1097, 128
          %1130 = vxpose.xlu0.b32.cont [6/16] %v1098, 128
          %1131 = vxpose.xlu0.b32.cont [7/16] %v1099, 128
          %1132 = vxpose.xlu0.b32.cont [8/16] %v1100, 128
          %1133 = vxpose.xlu0.b32.cont [9/16] %v1101, 128
          %1134 = vxpose.xlu0.b32.cont [10/16] %v1102, 128
          %1135 = vxpose.xlu0.b32.cont [11/16] %v1103, 128
          %1136 = vxpose.xlu0.b32.cont [12/16] %v1104, 128
          %1137 = vxpose.xlu0.b32.cont [13/16] %v1105, 128
          %1138 = vxpose.xlu0.b32.cont [14/16] %v1106, 128
          %1139 = vxpose.xlu0.b32.cont [15/16] %v1107, 128
          %1140 = vxpose.xlu0.b32.end [16/16] %v1108, 128
          %v1141 = vpop.trf.xlu0
          %v1142 = vpop.trf.xlu0
          %v1143 = vpop.trf.xlu0
          %v1144 = vpop.trf.xlu0
          %v1145 = vpop.trf.xlu0
          %v1146 = vpop.trf.xlu0
          %v1147 = vpop.trf.xlu0
          %v1148 = vpop.trf.xlu0
          %v1149 = vpop.trf.xlu0
          %v1150 = vpop.trf.xlu0
          %v1151 = vpop.trf.xlu0
          %v1152 = vpop.trf.xlu0
          %v1153 = vpop.trf.xlu0
          %v1154 = vpop.trf.xlu0
          %v1155 = vpop.trf.xlu0
          %v1156 = vpop.trf.xlu0
          %1157 = vmatprep.subr.mxu0 0.0
          %1158 = vmatpush1.msra.mxu0 %v1124
          %1159 = vmatprep.subr.mxu0 0.0
          %1160 = vmatpush1.msra.mxu0 %v1123
          %1161 = vmatprep.subr.mxu0 0.0
          %1162 = vmatpush1.msra.mxu0 %v1122
          %1163 = vmatprep.subr.mxu0 0.0
          %1164 = vmatpush1.msra.mxu0 %v1121
          %1165 = vmatprep.subr.mxu0 0.0
          %1166 = vmatpush1.msra.mxu0 %v1120
          %1167 = vmatprep.subr.mxu0 0.0
          %1168 = vmatpush1.msra.mxu0 %v1119
          %1169 = vmatprep.subr.mxu0 0.0
          %1170 = vmatpush1.msra.mxu0 %v1118
          %1171 = vmatprep.subr.mxu0 0.0
          %1172 = vmatpush1.msra.mxu0 %v1117
          %1173 = vmatprep.subr.mxu0 0.0
          %1174 = vmatpush1.msra.mxu0 %v1116
          %1175 = vmatprep.subr.mxu0 0.0
          %1176 = vmatpush1.msra.mxu0 %v1115
          %1177 = vmatprep.subr.mxu0 0.0
          %1178 = vmatpush1.msra.mxu0 %v1114
          %1179 = vmatprep.subr.mxu0 0.0
          %1180 = vmatpush1.msra.mxu0 %v1113
          %1181 = vmatprep.subr.mxu0 0.0
          %1182 = vmatpush1.msra.mxu0 %v1112
          %1183 = vmatprep.subr.mxu0 0.0
          %1184 = vmatpush1.msra.mxu0 %v1111
          %1185 = vmatprep.subr.mxu0 0.0
          %1186 = vmatpush1.msra.mxu0 %v1110
          %1187 = vmatprep.subr.mxu0 0.0
          %1188 = vmatpush1.msra.mxu0 %v1109
          %1189 = vmatprep.subr.mxu0 0.0
          %1190 = vmatpush2.msra.mxu0 0.0
          %1191 = vmatprep.subr.mxu0 0.0
          %1192 = vmatpush2.msra.mxu0 0.0
          %1193 = vmatprep.subr.mxu0 0.0
          %1194 = vmatpush2.msra.mxu0 0.0
          %1195 = vmatprep.subr.mxu0 0.0
          %1196 = vmatpush2.msra.mxu0 0.0
          %1197 = vmatprep.subr.mxu0 0.0
          %1198 = vmatpush2.msra.mxu0 0.0
          %1199 = vmatprep.subr.mxu0 0.0
          %1200 = vmatpush2.msra.mxu0 0.0
          %1201 = vmatprep.subr.mxu0 0.0
          %1202 = vmatpush2.msra.mxu0 0.0
          %1203 = vmatprep.subr.mxu0 0.0
          %1204 = vmatpush2.msra.mxu0 0.0
          %1205 = vmatprep.subr.mxu0 0.0
          %1206 = vmatpush2.msra.mxu0 0.0
          %1207 = vmatprep.subr.mxu0 0.0
          %1208 = vmatpush2.msra.mxu0 0.0
          %1209 = vmatprep.subr.mxu0 0.0
          %1210 = vmatpush2.msra.mxu0 0.0
          %1211 = vmatprep.subr.mxu0 0.0
          %1212 = vmatpush2.msra.mxu0 0.0
          %1213 = vmatprep.subr.mxu0 0.0
          %1214 = vmatpush2.msra.mxu0 0.0
          %1215 = vmatprep.subr.mxu0 0.0
          %1216 = vmatpush2.msra.mxu0 0.0
          %1217 = vmatprep.subr.mxu0 0.0
          %1218 = vmatpush2.msra.mxu0 0.0
          %1219 = vmatprep.subr.mxu0 0.0
          %1220 = vmatpush2.msra.mxu0 0.0
          %1221 = vmatprep.mubr.f32.mxu0 0.0
          %1222 = vmatmul.mubr.f32.gmra.mxu0 %v1141
          %v1223 = vpop.f32.mrf.mxu0
          %v1224 = vadd.f32 0.0, %v1223
          %v1225 = vpop.f32.mrf.mxu0
          %1226 = vmatprep.mubr.f32.mxu0 0.0
          %1227 = vmatmul.mubr.f32.gmra.mxu0 %v1142
          %v1228 = vpop.f32.mrf.mxu0
          %v1229 = vadd.f32 0.0, %v1228
          %v1230 = vpop.f32.mrf.mxu0
          %1231 = vmatprep.mubr.f32.mxu0 0.0
          %1232 = vmatmul.mubr.f32.gmra.mxu0 %v1143
          %v1233 = vpop.f32.mrf.mxu0
          %v1234 = vadd.f32 0.0, %v1233
          %v1235 = vpop.f32.mrf.mxu0
          %1236 = vmatprep.mubr.f32.mxu0 0.0
          %1237 = vmatmul.mubr.f32.gmra.mxu0 %v1144
          %v1238 = vpop.f32.mrf.mxu0
          %v1239 = vadd.f32 0.0, %v1238
          %v1240 = vpop.f32.mrf.mxu0
          %1241 = vmatprep.mubr.f32.mxu0 0.0
          %1242 = vmatmul.mubr.f32.gmra.mxu0 %v1145
          %v1243 = vpop.f32.mrf.mxu0
          %v1244 = vadd.f32 0.0, %v1243
          %v1245 = vpop.f32.mrf.mxu0
          %1246 = vmatprep.mubr.f32.mxu0 0.0
          %1247 = vmatmul.mubr.f32.gmra.mxu0 %v1146
          %v1248 = vpop.f32.mrf.mxu0
          %v1249 = vadd.f32 0.0, %v1248
          %v1250 = vpop.f32.mrf.mxu0
          %1251 = vmatprep.mubr.f32.mxu0 0.0
          %1252 = vmatmul.mubr.f32.gmra.mxu0 %v1147
          %v1253 = vpop.f32.mrf.mxu0
          %v1254 = vadd.f32 0.0, %v1253
          %v1255 = vpop.f32.mrf.mxu0
          %1256 = vmatprep.mubr.f32.mxu0 0.0
          %1257 = vmatmul.mubr.f32.gmra.mxu0 %v1148
          %v1258 = vpop.f32.mrf.mxu0
          %v1259 = vadd.f32 0.0, %v1258
          %v1260 = vpop.f32.mrf.mxu0
          %1261 = vmatprep.mubr.f32.mxu0 0.0
          %1262 = vmatmul.mubr.f32.gmra.mxu0 %v1149
          %v1263 = vpop.f32.mrf.mxu0
          %v1264 = vadd.f32 0.0, %v1263
          %v1265 = vpop.f32.mrf.mxu0
          %1266 = vmatprep.mubr.f32.mxu0 0.0
          %1267 = vmatmul.mubr.f32.gmra.mxu0 %v1150
          %v1268 = vpop.f32.mrf.mxu0
          %v1269 = vadd.f32 0.0, %v1268
          %v1270 = vpop.f32.mrf.mxu0
          %1271 = vmatprep.mubr.f32.mxu0 0.0
          %1272 = vmatmul.mubr.f32.gmra.mxu0 %v1151
          %v1273 = vpop.f32.mrf.mxu0
          %v1274 = vadd.f32 0.0, %v1273
          %v1275 = vpop.f32.mrf.mxu0
          %1276 = vmatprep.mubr.f32.mxu0 0.0
          %1277 = vmatmul.mubr.f32.gmra.mxu0 %v1152
          %v1278 = vpop.f32.mrf.mxu0
          %v1279 = vadd.f32 0.0, %v1278
          %v1280 = vpop.f32.mrf.mxu0
          %1281 = vmatprep.mubr.f32.mxu0 0.0
          %1282 = vmatmul.mubr.f32.gmra.mxu0 %v1153
          %v1283 = vpop.f32.mrf.mxu0
          %v1284 = vadd.f32 0.0, %v1283
          %v1285 = vpop.f32.mrf.mxu0
          %1286 = vmatprep.mubr.f32.mxu0 0.0
          %1287 = vmatmul.mubr.f32.gmra.mxu0 %v1154
          %v1288 = vpop.f32.mrf.mxu0
          %v1289 = vadd.f32 0.0, %v1288
          %v1290 = vpop.f32.mrf.mxu0
          %1291 = vmatprep.mubr.f32.mxu0 0.0
          %1292 = vmatmul.mubr.f32.gmra.mxu0 %v1155
          %v1293 = vpop.f32.mrf.mxu0
          %v1294 = vadd.f32 0.0, %v1293
          %v1295 = vpop.f32.mrf.mxu0
          %1296 = vmatprep.mubr.f32.mxu0 0.0
          %1297 = vmatmul.mubr.f32.gmra.mxu0 %v1156
          %v1298 = vpop.f32.mrf.mxu0
          %v1299 = vadd.f32 0.0, %v1298
          %v1300 = vpop.f32.mrf.mxu0
          %1301 = vdwg.mxu0
          %v1302 = vtanh.pop %v1224
          %v1303 = vtanh.pop %v1229
          %v1304 = vtanh.pop %v1234
          %v1305 = vtanh.pop %v1239
          %v1306 = vtanh.pop %v1244
          %v1307 = vtanh.pop %v1249
          %v1308 = vtanh.pop %v1254
          %v1309 = vtanh.pop %v1259
          %v1310 = vtanh.pop %v1264
          %v1311 = vtanh.pop %v1269
          %v1312 = vtanh.pop %v1274
          %v1313 = vtanh.pop %v1279
          %v1314 = vtanh.pop %v1284
          %v1315 = vtanh.pop %v1289
          %v1316 = vtanh.pop %v1294
          %v1317 = vtanh.pop %v1299
          %1318 = vst [vmem:[%s340] sm:$0xff] %v1302
          %1319 = vst [vmem:[%s340 + $0x8] sm:$0xff] %v1303
          %1320 = vst [vmem:[%s340 + $0x10] sm:$0xff] %v1304
          %1321 = vst [vmem:[%s340 + $0x18] sm:$0xff] %v1305
          %1322 = vst [vmem:[%s340 + $0x20] sm:$0xff] %v1306
          %1323 = vst [vmem:[%s340 + $0x28] sm:$0xff] %v1307
          %1324 = vst [vmem:[%s340 + $0x30] sm:$0xff] %v1308
          %1325 = vst [vmem:[%s340 + $0x38] sm:$0xff] %v1309
          %1326 = vst [vmem:[%s340 + $0x40] sm:$0xff] %v1310
          %1327 = vst [vmem:[%s340 + $0x48] sm:$0xff] %v1311
          %1328 = vst [vmem:[%s340 + $0x50] sm:$0xff] %v1312
          %1329 = vst [vmem:[%s340 + $0x58] sm:$0xff] %v1313
          %1330 = vst [vmem:[%s340 + $0x60] sm:$0xff] %v1314
          %1331 = vst [vmem:[%s340 + $0x68] sm:$0xff] %v1315
          %1332 = vst [vmem:[%s340 + $0x70] sm:$0xff] %v1316
          %1333 = vst [vmem:[%s340 + $0x78] sm:$0xff] %v1317
        $region60: #{tpu_custom_call.1} parent=39 // pred_fallthru
          _
        %s1334 = sand.u32 %s170, 1
        %s1335 = scalar_lea.sflag [#allocation7], %s1334
        %s1336 = sand.u32 %s170, 1
        %s1337 = smul.addr %s1336, 128
        %s1338 = scalar_lea.vmem [#allocation11], %s1337
        // Predicated region
        $region61: #{tpu_custom_call.1} parent=39 // pred_check
          %p1339 = pneg %p180
        $region62: #{tpu_custom_call.1} parent=39 // pred_check_branch
          %1341 = sbr.rel (%p1339) target = $region64
        $region63: #{tpu_custom_call.1} parent=39 // pred_region
          %s1342 = smul.u32 16, %s29
          %s1344 = ssub.s32 2048, 2048
          %1345 = vsyncadd %s1335, %s1344
          %s1346 = smul.addr %s1342, 128
          %s1347 = scalar_lea.hbm %s5, %s1346
          %s1348 = sshll.u32 %s1338, 4
          %s1349 = int_to_ptr.vmem [resolvable:$true] %s1348
          %1354 = dma.vmem_to_hbm [thread:$0]  %s1349, 2048, %s1347, %s1335, 128, 128, 8
        $region64: #{tpu_custom_call.1} parent=39 // pred_fallthru
          _
      $region40: #{tpu_custom_call.1} parent=5 // pred_fallthru
        _
      %p1355 = scmp.le.s32.totalorder 2, %s20
      // Predicated region
      $region65: #{tpu_custom_call.1} parent=5 // pred_check
        %p1356 = pneg %p1355
      $region66: #{tpu_custom_call.1} parent=5 // pred_check_branch
        %1358 = sbr.rel (%p1356) target = $region68
      $region67: #{tpu_custom_call.1} parent=5 // pred_region
        %s1359 = ssub.s32 %s20, 2
        // Predicated region
        $region69: #{tpu_custom_call.1} parent=67 // pred_check
          %p1360 = pneg %p186
        $region70: #{tpu_custom_call.1} parent=67 // pred_check_branch
          %1362 = sbr.rel (%p1360) target = $region72
        $region71: #{tpu_custom_call.1} parent=67 // pred_region
          %s1363 = sand.u32 %s171, 1
          %s1364 = scalar_lea.sflag [#allocation7], %s1363
          %s1365 = sand.u32 %s171, 1
          %s1366 = smul.addr %s1365, 128
          %s1367 = scalar_lea.vmem [#allocation11], %s1366
          %1368 = dma.done %s1364, 2048
        $region72: #{tpu_custom_call.1} parent=67 // pred_fallthru
          _
      $region68: #{tpu_custom_call.1} parent=5 // pred_fallthru
        _
    $region6: #{tpu_custom_call.1} parent=1 // loop_footer
      %s24 = sadd.s32 1, %s20
    $region7: #{tpu_custom_call.1} parent=1 // loop_footer_branch
      %19 = sbr.rel target = $region3
    $region8: #{tpu_custom_call.1} parent=1 // loop_exit
      _
    %1369 = vsyncpa [#allocation6], 1
    %s1370 = scalar_lea.sflag [#allocation6], 1
    %1371 = vsyncpa %s1370, 1
    %1372 = vsyncpa [#allocation9], 1
    %s1373 = scalar_lea.sflag [#allocation9], 1
    %1374 = vsyncpa %s1373, 1
    %1375 = vsyncpa [#allocation7], 1
    %s1376 = scalar_lea.sflag [#allocation7], 1
    %1377 = vsyncpa %s1376, 1

</llo_original>
